<compile_context>
chip_gen: v5e
topology: v5e:2x2
jax: 0.10.0
libtpu: 0.0.40
codegen_flags: <defaults>
</compile_context>

<pallas_src>
import functools

import jax
import jax.numpy as jnp
from jax.experimental import pallas as pl
from jax.experimental.pallas import tpu as pltpu


def _tada_conv2d_kernel(x_ref, a_ref, w_ref, o_ref, *, kh, kw, h_out, w_out):
    """One (batch, time) frame.

    x_ref: (1, 1, Hp, Wp, C_in)   spatially pre-padded input plane (channels-last)
    a_ref: (1, 1, 1, C_in)        per-frame per-channel calibration (alpha)
    w_ref: (kh*kw, C_in, C_out)   shared base conv weight, taps on the leading axis
    o_ref: (1, 1, H_out, W_out, C_out)
    """
    c_in = x_ref.shape[-1]
    c_out = w_ref.shape[-1]

    alpha = a_ref[0, 0].astype(jnp.float32).reshape(1, 1, c_in)
    x = x_ref[0, 0].astype(jnp.float32)            # (Hp, Wp, C_in)
    xs = x * alpha                                 # fold alpha into the input

    acc = jnp.zeros((h_out * w_out, c_out), jnp.float32)
    for dh in range(kh):                           # static unroll over taps
        for dw in range(kw):
            win = xs[dh:dh + h_out, dw:dw + w_out, :].reshape(h_out * w_out, c_in)
            acc = acc + jnp.dot(win, w_ref[dh * kw + dw].astype(jnp.float32),
                                preferred_element_type=jnp.float32)

    o_ref[0, 0] = acc.reshape(h_out, w_out, c_out).astype(o_ref.dtype)


def tada_conv2d(x, alpha, weight, *, stride=(1, 1), padding=(1, 1),
                dilation=(1, 1), groups=1):
    """TAdaConv2d forward.

    x:      (N, C_in, T, H, W)            feature (PyTorch NCDHW)
    alpha:  (N, C_in, T, 1, 1)            calibration weights
    weight: (1, 1, C_out, C_in, kh, kw)   base weight (PyTorch parameter layout)
    Returns (N, C_out, T, H_out, W_out).
    """
    assert stride == (1, 1) and dilation == (1, 1) and groups == 1, \
        "only stride=1, dilation=1, groups=1 implemented"
    # TODO(synk): strided / dilated / grouped spatial conv not implemented.
    # (bias is not implemented here because TAdaConv2d.forward itself raises
    #  NotImplementedError when bias is set.)

    N, C_in, T, H, W = x.shape
    _, _, C_out, c_in_w, kh, kw = weight.shape
    assert c_in_w == C_in
    ph, pw = padding
    h_out = H + 2 * ph - (kh - 1)
    w_out = W + 2 * pw - (kw - 1)
    hp, wp = H + 2 * ph, W + 2 * pw

    # glue: channels-last + one-time spatial zero padding (keeps kernel slices static)
    x_k = jnp.transpose(x, (0, 2, 3, 4, 1))                          # (N, T, H, W, C_in)
    x_k = jnp.pad(x_k, ((0, 0), (0, 0), (ph, ph), (pw, pw), (0, 0)))  # (N, T, Hp, Wp, C_in)
    a_k = jnp.transpose(alpha[:, :, :, 0, 0], (0, 2, 1))[:, :, None, :]  # (N, T, 1, C_in)
    w_k = jnp.transpose(weight[0, 0], (2, 3, 1, 0)).reshape(kh * kw, C_in, C_out)

    itemsize = jnp.dtype(x.dtype).itemsize
    flops = 2 * N * T * h_out * w_out * C_in * C_out * kh * kw
    bytes_accessed = (x_k.size + a_k.size + w_k.size
                      + N * T * h_out * w_out * C_out) * itemsize

    out = pl.pallas_call(
        functools.partial(_tada_conv2d_kernel, kh=kh, kw=kw,
                          h_out=h_out, w_out=w_out),
        out_shape=jax.ShapeDtypeStruct((N, T, h_out, w_out, C_out), x.dtype),
        grid=(N, T),
        in_specs=[
            pl.BlockSpec((1, 1, hp, wp, C_in), lambda n, t: (n, t, 0, 0, 0)),
            pl.BlockSpec((1, 1, 1, C_in), lambda n, t: (n, t, 0, 0)),
            # constant index_map -> weights stay resident, no per-step re-DMA
            pl.BlockSpec((kh * kw, C_in, C_out), lambda n, t: (0, 0, 0)),
        ],
        out_specs=pl.BlockSpec((1, 1, h_out, w_out, C_out),
                               lambda n, t: (n, t, 0, 0, 0)),
        compiler_params=pltpu.CompilerParams(
            dimension_semantics=("parallel", "parallel")),
        cost_estimate=pl.CostEstimate(flops=flops, transcendentals=0,
                                      bytes_accessed=bytes_accessed),
    )(x_k, a_k, w_k)

    # back to PyTorch output layout (N, C_out, T, H_out, W_out)
    return jnp.transpose(out, (0, 4, 1, 2, 3))


def _ref_forward(x, alpha, weight, *, padding):
    """Literal pure-JAX transcription of TAdaConv2d.forward (grouped conv)."""
    N, C_in, T, H, W = x.shape
    _, _, C_out, _, kh, kw = weight.shape
    xg = jnp.transpose(x, (0, 2, 1, 3, 4)).reshape(1, N * T * C_in, H, W)
    w_t = jnp.transpose(alpha, (0, 2, 1, 3, 4))[:, :, None] * weight
    w_t = w_t.reshape(N * T * C_out, C_in, kh, kw)
    out = jax.lax.conv_general_dilated(
        xg, w_t, window_strides=(1, 1),
        padding=((padding[0], padding[0]), (padding[1], padding[1])),
        dimension_numbers=("NCHW", "OIHW", "NCHW"),
        feature_group_count=N * T,
        precision=jax.lax.Precision.HIGHEST)
    return jnp.transpose(out.reshape(N, T, C_out, H, W), (0, 2, 1, 3, 4))


if __name__ == "__main__":
    key = jax.random.PRNGKey(0)
    N, C_in, C_out, T, H, W = 2, 16, 32, 4, 16, 16
    kh = kw = 3

    kx, ka, kw_key = jax.random.split(key, 3)
    x = jax.random.normal(kx, (N, C_in, T, H, W), jnp.float32)
    # routing-function output is ~1 + small per-frame adjustment
    alpha = 1.0 + 0.1 * jax.random.normal(ka, (N, C_in, T, 1, 1), jnp.float32)
    weight = 0.1 * jax.random.normal(kw_key, (1, 1, C_out, C_in, kh, kw),
                                     jnp.float32)

    out = tada_conv2d(x, alpha, weight, padding=(kh // 2, kw // 2))
    out = jax.block_until_ready(out)

    ref = _ref_forward(x, alpha, weight, padding=(kh // 2, kw // 2))
    assert out.shape == (N, C_out, T, H, W), out.shape
    err = float(jnp.max(jnp.abs(out - ref)))
    assert jnp.allclose(out, ref, atol=2e-3, rtol=2e-3), err
    print("KERNEL_OK")
</pallas_src>

<mosaic_0001>
module attributes {stable_mosaic.version = 11 : i64} {
  func.func @_tada_conv2d_kernel(%arg0: i32, %arg1: i32, %arg2: memref<1x1x18x18x16xf32, #tpu.memory_space<vmem>>, %arg3: memref<1x1x1x16xf32, #tpu.memory_space<vmem>>, %arg4: memref<9x16x32xf32, #tpu.memory_space<vmem>>, %arg5: memref<1x1x16x16x32xf32, #tpu.memory_space<vmem>>) attributes {dimension_semantics = [#tpu.dimension_semantics<parallel>, #tpu.dimension_semantics<parallel>], iteration_bounds = array<i64: 2, 4>, scalar_prefetch = 0 : i64, scratch_operands = 0 : i64, tpu.core_type = #tpu.core_type<tc>, window_params = [{transform_indices = @transform_0, window_bounds = array<i64: 1, 1, 18, 18, 16>}, {transform_indices = @transform_1, window_bounds = array<i64: 1, 1, 1, 16>}, {pipeline_mode = #tpu.pipeline_mode<synchronous>, transform_indices = @transform_2, window_bounds = array<i64: 9, 16, 32>}, {transform_indices = @transform_3, window_bounds = array<i64: 1, 1, 16, 16, 32>}]} {
    %c0 = arith.constant 0 : index
    %c0_0 = arith.constant 0 : index
    %c0_1 = arith.constant 0 : index
    %c0_2 = arith.constant 0 : index
    %0 = vector.load %arg3[%c0, %c0_0, %c0_1, %c0_2] : memref<1x1x1x16xf32, #tpu.memory_space<vmem>>, vector<1x1x1x16xf32>
    %1 = vector.shape_cast %0 : vector<1x1x1x16xf32> to vector<1x16xf32>
    %2 = vector.shape_cast %1 : vector<1x16xf32> to vector<1x1x16xf32>
    %c0_3 = arith.constant 0 : index
    %c0_4 = arith.constant 0 : index
    %c0_5 = arith.constant 0 : index
    %c0_6 = arith.constant 0 : index
    %c0_7 = arith.constant 0 : index
    %3 = vector.load %arg2[%c0_3, %c0_4, %c0_5, %c0_6, %c0_7] : memref<1x1x18x18x16xf32, #tpu.memory_space<vmem>>, vector<1x1x18x18x16xf32>
    %4 = vector.shape_cast %3 : vector<1x1x18x18x16xf32> to vector<18x18x16xf32>
    %5 = vector.broadcast %2 : vector<1x1x16xf32> to vector<18x18x16xf32>
    %6 = arith.mulf %4, %5 : vector<18x18x16xf32>
    %cst = arith.constant 0.000000e+00 : f32
    %7 = vector.broadcast %cst : f32 to vector<256x32xf32>
    %8 = vector.extract_strided_slice %6 {offsets = [0, 0, 0], sizes = [16, 16, 16], strides = [1, 1, 1]} : vector<18x18x16xf32> to vector<16x16x16xf32>
    %9 = vector.shape_cast %8 : vector<16x16x16xf32> to vector<256x16xf32>
    %c0_8 = arith.constant 0 : index
    %c0_9 = arith.constant 0 : index
    %c0_10 = arith.constant 0 : index
    %10 = vector.load %arg4[%c0_8, %c0_9, %c0_10] : memref<9x16x32xf32, #tpu.memory_space<vmem>>, vector<1x16x32xf32>
    %11 = vector.shape_cast %10 : vector<1x16x32xf32> to vector<16x32xf32>
    %cst_11 = arith.constant dense<0.000000e+00> : vector<256x32xf32>
    %12 = tpu.matmul %9, %11, %cst_11 {dimension_numbers = #tpu.dot_dimension_numbers<[1], [0], [0], [1], [0, 0, 1, 1], [], []>} : vector<256x16xf32>, vector<16x32xf32>, vector<256x32xf32> -> vector<256x32xf32>
    %13 = arith.addf %7, %12 : vector<256x32xf32>
    %14 = vector.extract_strided_slice %6 {offsets = [0, 1, 0], sizes = [16, 16, 16], strides = [1, 1, 1]} : vector<18x18x16xf32> to vector<16x16x16xf32>
    %15 = vector.shape_cast %14 : vector<16x16x16xf32> to vector<256x16xf32>
    %c1 = arith.constant 1 : index
    %c0_12 = arith.constant 0 : index
    %c0_13 = arith.constant 0 : index
    %16 = vector.load %arg4[%c1, %c0_12, %c0_13] : memref<9x16x32xf32, #tpu.memory_space<vmem>>, vector<1x16x32xf32>
    %17 = vector.shape_cast %16 : vector<1x16x32xf32> to vector<16x32xf32>
    %cst_14 = arith.constant dense<0.000000e+00> : vector<256x32xf32>
    %18 = tpu.matmul %15, %17, %cst_14 {dimension_numbers = #tpu.dot_dimension_numbers<[1], [0], [0], [1], [0, 0, 1, 1], [], []>} : vector<256x16xf32>, vector<16x32xf32>, vector<256x32xf32> -> vector<256x32xf32>
    %19 = arith.addf %13, %18 : vector<256x32xf32>
    %20 = vector.extract_strided_slice %6 {offsets = [0, 2, 0], sizes = [16, 16, 16], strides = [1, 1, 1]} : vector<18x18x16xf32> to vector<16x16x16xf32>
    %21 = vector.shape_cast %20 : vector<16x16x16xf32> to vector<256x16xf32>
    %c2 = arith.constant 2 : index
    %c0_15 = arith.constant 0 : index
    %c0_16 = arith.constant 0 : index
    %22 = vector.load %arg4[%c2, %c0_15, %c0_16] : memref<9x16x32xf32, #tpu.memory_space<vmem>>, vector<1x16x32xf32>
    %23 = vector.shape_cast %22 : vector<1x16x32xf32> to vector<16x32xf32>
    %cst_17 = arith.constant dense<0.000000e+00> : vector<256x32xf32>
    %24 = tpu.matmul %21, %23, %cst_17 {dimension_numbers = #tpu.dot_dimension_numbers<[1], [0], [0], [1], [0, 0, 1, 1], [], []>} : vector<256x16xf32>, vector<16x32xf32>, vector<256x32xf32> -> vector<256x32xf32>
    %25 = arith.addf %19, %24 : vector<256x32xf32>
    %26 = vector.extract_strided_slice %6 {offsets = [1, 0, 0], sizes = [16, 16, 16], strides = [1, 1, 1]} : vector<18x18x16xf32> to vector<16x16x16xf32>
    %27 = vector.shape_cast %26 : vector<16x16x16xf32> to vector<256x16xf32>
    %c3 = arith.constant 3 : index
    %c0_18 = arith.constant 0 : index
    %c0_19 = arith.constant 0 : index
    %28 = vector.load %arg4[%c3, %c0_18, %c0_19] : memref<9x16x32xf32, #tpu.memory_space<vmem>>, vector<1x16x32xf32>
    %29 = vector.shape_cast %28 : vector<1x16x32xf32> to vector<16x32xf32>
    %cst_20 = arith.constant dense<0.000000e+00> : vector<256x32xf32>
    %30 = tpu.matmul %27, %29, %cst_20 {dimension_numbers = #tpu.dot_dimension_numbers<[1], [0], [0], [1], [0, 0, 1, 1], [], []>} : vector<256x16xf32>, vector<16x32xf32>, vector<256x32xf32> -> vector<256x32xf32>
    %31 = arith.addf %25, %30 : vector<256x32xf32>
    %32 = vector.extract_strided_slice %6 {offsets = [1, 1, 0], sizes = [16, 16, 16], strides = [1, 1, 1]} : vector<18x18x16xf32> to vector<16x16x16xf32>
    %33 = vector.shape_cast %32 : vector<16x16x16xf32> to vector<256x16xf32>
    %c4 = arith.constant 4 : index
    %c0_21 = arith.constant 0 : index
    %c0_22 = arith.constant 0 : index
    %34 = vector.load %arg4[%c4, %c0_21, %c0_22] : memref<9x16x32xf32, #tpu.memory_space<vmem>>, vector<1x16x32xf32>
    %35 = vector.shape_cast %34 : vector<1x16x32xf32> to vector<16x32xf32>
    %cst_23 = arith.constant dense<0.000000e+00> : vector<256x32xf32>
    %36 = tpu.matmul %33, %35, %cst_23 {dimension_numbers = #tpu.dot_dimension_numbers<[1], [0], [0], [1], [0, 0, 1, 1], [], []>} : vector<256x16xf32>, vector<16x32xf32>, vector<256x32xf32> -> vector<256x32xf32>
    %37 = arith.addf %31, %36 : vector<256x32xf32>
    %38 = vector.extract_strided_slice %6 {offsets = [1, 2, 0], sizes = [16, 16, 16], strides = [1, 1, 1]} : vector<18x18x16xf32> to vector<16x16x16xf32>
    %39 = vector.shape_cast %38 : vector<16x16x16xf32> to vector<256x16xf32>
    %c5 = arith.constant 5 : index
    %c0_24 = arith.constant 0 : index
    %c0_25 = arith.constant 0 : index
    %40 = vector.load %arg4[%c5, %c0_24, %c0_25] : memref<9x16x32xf32, #tpu.memory_space<vmem>>, vector<1x16x32xf32>
    %41 = vector.shape_cast %40 : vector<1x16x32xf32> to vector<16x32xf32>
    %cst_26 = arith.constant dense<0.000000e+00> : vector<256x32xf32>
    %42 = tpu.matmul %39, %41, %cst_26 {dimension_numbers = #tpu.dot_dimension_numbers<[1], [0], [0], [1], [0, 0, 1, 1], [], []>} : vector<256x16xf32>, vector<16x32xf32>, vector<256x32xf32> -> vector<256x32xf32>
    %43 = arith.addf %37, %42 : vector<256x32xf32>
    %44 = vector.extract_strided_slice %6 {offsets = [2, 0, 0], sizes = [16, 16, 16], strides = [1, 1, 1]} : vector<18x18x16xf32> to vector<16x16x16xf32>
    %45 = vector.shape_cast %44 : vector<16x16x16xf32> to vector<256x16xf32>
    %c6 = arith.constant 6 : index
    %c0_27 = arith.constant 0 : index
    %c0_28 = arith.constant 0 : index
    %46 = vector.load %arg4[%c6, %c0_27, %c0_28] : memref<9x16x32xf32, #tpu.memory_space<vmem>>, vector<1x16x32xf32>
    %47 = vector.shape_cast %46 : vector<1x16x32xf32> to vector<16x32xf32>
    %cst_29 = arith.constant dense<0.000000e+00> : vector<256x32xf32>
    %48 = tpu.matmul %45, %47, %cst_29 {dimension_numbers = #tpu.dot_dimension_numbers<[1], [0], [0], [1], [0, 0, 1, 1], [], []>} : vector<256x16xf32>, vector<16x32xf32>, vector<256x32xf32> -> vector<256x32xf32>
    %49 = arith.addf %43, %48 : vector<256x32xf32>
    %50 = vector.extract_strided_slice %6 {offsets = [2, 1, 0], sizes = [16, 16, 16], strides = [1, 1, 1]} : vector<18x18x16xf32> to vector<16x16x16xf32>
    %51 = vector.shape_cast %50 : vector<16x16x16xf32> to vector<256x16xf32>
    %c7 = arith.constant 7 : index
    %c0_30 = arith.constant 0 : index
    %c0_31 = arith.constant 0 : index
    %52 = vector.load %arg4[%c7, %c0_30, %c0_31] : memref<9x16x32xf32, #tpu.memory_space<vmem>>, vector<1x16x32xf32>
    %53 = vector.shape_cast %52 : vector<1x16x32xf32> to vector<16x32xf32>
    %cst_32 = arith.constant dense<0.000000e+00> : vector<256x32xf32>
    %54 = tpu.matmul %51, %53, %cst_32 {dimension_numbers = #tpu.dot_dimension_numbers<[1], [0], [0], [1], [0, 0, 1, 1], [], []>} : vector<256x16xf32>, vector<16x32xf32>, vector<256x32xf32> -> vector<256x32xf32>
    %55 = arith.addf %49, %54 : vector<256x32xf32>
    %56 = vector.extract_strided_slice %6 {offsets = [2, 2, 0], sizes = [16, 16, 16], strides = [1, 1, 1]} : vector<18x18x16xf32> to vector<16x16x16xf32>
    %57 = vector.shape_cast %56 : vector<16x16x16xf32> to vector<256x16xf32>
    %c8 = arith.constant 8 : index
    %c0_33 = arith.constant 0 : index
    %c0_34 = arith.constant 0 : index
    %58 = vector.load %arg4[%c8, %c0_33, %c0_34] : memref<9x16x32xf32, #tpu.memory_space<vmem>>, vector<1x16x32xf32>
    %59 = vector.shape_cast %58 : vector<1x16x32xf32> to vector<16x32xf32>
    %cst_35 = arith.constant dense<0.000000e+00> : vector<256x32xf32>
    %60 = tpu.matmul %57, %59, %cst_35 {dimension_numbers = #tpu.dot_dimension_numbers<[1], [0], [0], [1], [0, 0, 1, 1], [], []>} : vector<256x16xf32>, vector<16x32xf32>, vector<256x32xf32> -> vector<256x32xf32>
    %61 = arith.addf %55, %60 : vector<256x32xf32>
    %62 = vector.shape_cast %61 : vector<256x32xf32> to vector<16x16x32xf32>
    %c0_36 = arith.constant 0 : index
    %c0_37 = arith.constant 0 : index
    %c0_38 = arith.constant 0 : index
    %c0_39 = arith.constant 0 : index
    %c0_40 = arith.constant 0 : index
    %63 = vector.load %arg5[%c0_36, %c0_37, %c0_38, %c0_39, %c0_40] : memref<1x1x16x16x32xf32, #tpu.memory_space<vmem>>, vector<1x1x16x16x32xf32>
    %64 = vector.shape_cast %63 : vector<1x1x16x16x32xf32> to vector<16x16x32xf32>
    %65 = vector.shape_cast %62 : vector<16x16x32xf32> to vector<1x1x16x16x32xf32>
    tpu.vector_store %arg5[%c0_36, %c0_37, %c0_38, %c0_39, %c0_40], %65 {strides = array<i32>} : memref<1x1x16x16x32xf32, #tpu.memory_space<vmem>>, vector<1x1x16x16x32xf32>,
    return
  }
  func.func @transform_0(%arg0: i32, %arg1: i32) -> (i32, i32, i32, i32, i32) {
    %c0_i32 = arith.constant 0 : i32
    %c0_i32_0 = arith.constant 0 : i32
    %c0_i32_1 = arith.constant 0 : i32
    %c0_i32_2 = arith.constant 0 : i32
    return %arg0, %arg1, %c0_i32, %c0_i32_0, %c0_i32_1 : i32, i32, i32, i32, i32
  }
  func.func @transform_1(%arg0: i32, %arg1: i32) -> (i32, i32, i32, i32) {
    %c0_i32 = arith.constant 0 : i32
    %c0_i32_0 = arith.constant 0 : i32
    %c0_i32_1 = arith.constant 0 : i32
    return %arg0, %arg1, %c0_i32, %c0_i32_0 : i32, i32, i32, i32
  }
  func.func @transform_2(%arg0: i32, %arg1: i32) -> (i32, i32, i32) {
    %c0_i32 = arith.constant 0 : i32
    %c0_i32_0 = arith.constant 0 : i32
    %c0_i32_1 = arith.constant 0 : i32
    %c0_i32_2 = arith.constant 0 : i32
    return %c0_i32, %c0_i32_0, %c0_i32_1 : i32, i32, i32
  }
  func.func @transform_3(%arg0: i32, %arg1: i32) -> (i32, i32, i32, i32, i32) {
    %c0_i32 = arith.constant 0 : i32
    %c0_i32_0 = arith.constant 0 : i32
    %c0_i32_1 = arith.constant 0 : i32
    %c0_i32_2 = arith.constant 0 : i32
    return %arg0, %arg1, %c0_i32, %c0_i32_0, %c0_i32_1 : i32, i32, i32, i32, i32
  }
}

</mosaic_0001>

<llo_original>
// kernel: tpu_custom_call.1
$region0: #{tpu_custom_call.1}
  #allocation0 [shape = 'u32[]', space=smem, size = 0x4, offset = 0x4, fixed_abs, tag = 'smem constant byte address 0x4 - core index']
  #allocation1 [shape = 'u32[72,128]{1,0:T(1,128)}', space=vmem, size = 0x9000, scoped, tag = 'internal scratch']
  %s0 = inlined_call_operand.vmem [shape: f32[2,4,18,18,16], index: 0, kind: input, shape index: {}]
  %s1 = inlined_call_operand.vmem [shape: f32[2,4,1,16], index: 1, kind: input, shape index: {}]
  %s2 = inlined_call_operand.vmem [shape: f32[9,16,32], index: 2, kind: input, shape index: {}]
  %s3 = inlined_call_operand.hbm [shape: f32[2,4,16,16,32], index: 3, kind: output, shape index: {}]
  %s4 = sld [smem:[#allocation0]]
  $region45: #{tpu_custom_call.1} parent=0
    _
  %s6 = ssub.s32 1, %s4
  %s7 = scalar_select 0, %s6, %s4
  $region1: #{tpu_custom_call.1} parent=0
    #allocation2 [shape = 'u8[262144]{0}', space=vmem, size = 0x40000, scoped, tag = 'output window, operand 0']
    #allocation3 [shape = 's32[2]{0}', space=sflag, size = 0x8, scoped, tag = 'scoped memory for tpu_custom_call.1']
    %8 = vsyncpa [#allocation3], 0
    %s9 = scalar_lea.sflag [#allocation3], 1
    %10 = vsyncpa %s9, 0
    loop: start=0, step=1, limit=10
    $region2: #{tpu_custom_call.1} parent=1 // loop_pre_header
      _
    $region3: #{tpu_custom_call.1} parent=1 // loop_header
      %s12 = sphi 0, %s16
      %p13 = scmp.ge.s32.totalorder %s12, 10
      %s19 = sphi 0, %s31
      %s20 = sphi 0, %s27
      %s21 = sphi 0, %s19
      %s22 = sphi 0, %s20
      %s23 = sphi 0, %s21
      %s24 = sphi 0, %s22
      %s36 = sphi 0, %s38
      %s39 = sphi 0, %s36
      %s40 = sphi 0, %s39
      %s56 = sphi 0, %s40
      %s64 = sphi 0, %s66
      %s67 = sphi 0, %s64
      %s68 = sphi 0, %s67
      %s84 = sphi 0, %s68
      %s88 = sphi 0, %s88
      %s90 = sphi 0, %s88
      %s91 = sphi 0, %s90
      %s105 = sphi 0, %s91
      %s113 = sphi 0, %s115
      %s116 = sphi 0, %s113
      %s117 = sphi 0, %s116
      %s133 = sphi 0, %s117
    $region4: #{tpu_custom_call.1} parent=1 // loop_header_branch
      %15 = sbr.rel (%p13) target = $region8
    $region5: #{tpu_custom_call.1} parent=1 // loop_body
      %s17 = ssub.s32 %s12, 1
      %s18 = ssub.s32 %s12, 2
      %s25 = sadd.s32 1, %s20
      %p26 = scmp.ge.s32.totalorder %s25, 4
      %s27 = scalar_select %p26, 0, %s25
      %s28 = sadd.s32 1, %s19
      %s29 = scalar_select %p26, %s28, %s19
      %p30 = scmp.ge.s32.totalorder %s29, 2
      %s31 = scalar_select %p30, 0, %s29
      %s32 = ssub.s32 %s19, %s31
      %s33 = ssub.s32 %s20, %s27
      %s34 = sor.u32 %s32, %s33
      %p35 = scmp.eq.s32.totalorder %s34, 0
      %s37 = sadd.s32 %s36, 1
      %s38 = scalar_select %p35, %s36, %s37
      %p41 = pneg %p35
      %p42 = scmp.eq.s32.totalorder %s12, 7
      %p43 = por %p41, %p42
      %p44 = scmp.ne.s32.totalorder %s36, %s39
      %p45 = scmp.eq.s32.totalorder %s12, 0
      %p46 = por %p44, %p45
      %p47 = scmp.ne.s32.totalorder %s36, %s39
      %p48 = scmp.eq.s32.totalorder %s17, 7
      %p49 = por %p47, %p48
      %p50 = scmp.ne.s32.totalorder %s39, %s40
      %p51 = scmp.eq.s32.totalorder %s17, 0
      %p52 = por %p50, %p51
      %p53 = scmp.ne.s32.totalorder %s39, %s40
      %p54 = scmp.eq.s32.totalorder %s18, 7
      %p55 = por %p53, %p54
      %p57 = scmp.ne.s32.totalorder %s40, %s56
      %p58 = scmp.eq.s32.totalorder %s18, 0
      %p59 = por %p57, %p58
      %s60 = ssub.s32 %s19, %s31
      %s61 = ssub.s32 %s20, %s27
      %s62 = sor.u32 %s60, %s61
      %p63 = scmp.eq.s32.totalorder %s62, 0
      %s65 = sadd.s32 %s64, 1
      %s66 = scalar_select %p63, %s64, %s65
      %p69 = pneg %p63
      %p70 = scmp.eq.s32.totalorder %s12, 7
      %p71 = por %p69, %p70
      %p72 = scmp.ne.s32.totalorder %s64, %s67
      %p73 = scmp.eq.s32.totalorder %s12, 0
      %p74 = por %p72, %p73
      %p75 = scmp.ne.s32.totalorder %s64, %s67
      %p76 = scmp.eq.s32.totalorder %s17, 7
      %p77 = por %p75, %p76
      %p78 = scmp.ne.s32.totalorder %s67, %s68
      %p79 = scmp.eq.s32.totalorder %s17, 0
      %p80 = por %p78, %p79
      %p81 = scmp.ne.s32.totalorder %s67, %s68
      %p82 = scmp.eq.s32.totalorder %s18, 7
      %p83 = por %p81, %p82
      %p85 = scmp.ne.s32.totalorder %s68, %s84
      %p86 = scmp.eq.s32.totalorder %s18, 0
      %p87 = por %p85, %p86
      %s89 = sadd.s32 %s88, 1
      %p92 = scmp.eq.s32.totalorder %s12, 7
      %p93 = scmp.ne.s32.totalorder %s88, %s90
      %p94 = scmp.eq.s32.totalorder %s12, 0
      %p95 = por %p93, %p94
      %p96 = scmp.ne.s32.totalorder %s88, %s90
      %p97 = scmp.eq.s32.totalorder %s17, 7
      %p98 = por %p96, %p97
      %p99 = scmp.ne.s32.totalorder %s90, %s91
      %p100 = scmp.eq.s32.totalorder %s17, 0
      %p101 = por %p99, %p100
      %p102 = scmp.ne.s32.totalorder %s90, %s91
      %p103 = scmp.eq.s32.totalorder %s18, 7
      %p104 = por %p102, %p103
      %p106 = scmp.ne.s32.totalorder %s91, %s105
      %p107 = scmp.eq.s32.totalorder %s18, 0
      %p108 = por %p106, %p107
      %s109 = ssub.s32 %s19, %s31
      %s110 = ssub.s32 %s20, %s27
      %s111 = sor.u32 %s109, %s110
      %p112 = scmp.eq.s32.totalorder %s111, 0
      %s114 = sadd.s32 %s113, 1
      %s115 = scalar_select %p112, %s113, %s114
      %p118 = pneg %p112
      %p119 = scmp.eq.s32.totalorder %s12, 7
      %p120 = por %p118, %p119
      %p121 = scmp.ne.s32.totalorder %s113, %s116
      %p122 = scmp.eq.s32.totalorder %s12, 0
      %p123 = por %p121, %p122
      %p124 = scmp.ne.s32.totalorder %s113, %s116
      %p125 = scmp.eq.s32.totalorder %s17, 7
      %p126 = por %p124, %p125
      %p127 = scmp.ne.s32.totalorder %s116, %s117
      %p128 = scmp.eq.s32.totalorder %s17, 0
      %p129 = por %p127, %p128
      %p130 = scmp.ne.s32.totalorder %s116, %s117
      %p131 = scmp.eq.s32.totalorder %s18, 7
      %p132 = por %p130, %p131
      %p134 = scmp.ne.s32.totalorder %s117, %s133
      %p135 = scmp.eq.s32.totalorder %s18, 0
      %p136 = por %p134, %p135
      %p137 = scmp.le.s32.totalorder 1, %s12
      %p138 = scmp.lt.s32.totalorder %s12, 9
      %p139 = pnand %p137, %p138
      %p140 = pneg %p139
      // Predicated region
      $region9: #{tpu_custom_call.1} parent=5 // pred_check
        _
      $region10: #{tpu_custom_call.1} parent=5 // pred_check_branch
        %142 = sbr.rel (%p139) target = $region12
      $region11: #{tpu_custom_call.1} parent=5 // pred_region
        %s143 = ssub.s32 %s12, 1
        // Predicated region
        $region13: #{tpu_custom_call.1} parent=11 // pred_check
          %p144 = pneg %p101
        $region14: #{tpu_custom_call.1} parent=11 // pred_check_branch
          %146 = sbr.rel (%p144) target = $region16
        $region15: #{tpu_custom_call.1} parent=11 // pred_region
          _
        $region16: #{tpu_custom_call.1} parent=11 // pred_fallthru
          _
      $region12: #{tpu_custom_call.1} parent=5 // pred_fallthru
        _
      %p147 = scmp.lt.s32.totalorder %s12, 8
      // Predicated region
      $region17: #{tpu_custom_call.1} parent=5 // pred_check
        %p148 = pneg %p147
      $region18: #{tpu_custom_call.1} parent=5 // pred_check_branch
        %150 = sbr.rel (%p148) target = $region20
      $region19: #{tpu_custom_call.1} parent=5 // pred_region
        // Predicated region
        $region21: #{tpu_custom_call.1} parent=19 // pred_check
          %p151 = pneg %p46
        $region22: #{tpu_custom_call.1} parent=19 // pred_check_branch
          %153 = sbr.rel (%p151) target = $region24
        $region23: #{tpu_custom_call.1} parent=19 // pred_region
          %p154 = scmp.lt.s32.totalorder %s19, 1
          %s155 = scalar_select %p154, %s19, 1
          %p156 = scmp.lt.s32.totalorder %s20, 3
          %s157 = scalar_select %p156, %s20, 3
          %s158 = smul.addr %s157, 54
          %s159 = smul.addr %s155, 216
          %s160 = sadd.s32 %s158, %s159
          %s161 = smul.addr %s160, 8
          %s162 = scalar_lea.vmem %s0, %s161
        $region24: #{tpu_custom_call.1} parent=19 // pred_fallthru
          _
        // Predicated region
        $region25: #{tpu_custom_call.1} parent=19 // pred_check
          %p163 = pneg %p74
        $region26: #{tpu_custom_call.1} parent=19 // pred_check_branch
          %165 = sbr.rel (%p163) target = $region28
        $region27: #{tpu_custom_call.1} parent=19 // pred_region
          %p166 = scmp.lt.s32.totalorder %s19, 1
          %s167 = scalar_select %p166, %s19, 1
          %p168 = scmp.lt.s32.totalorder %s20, 3
          %s169 = scalar_select %p168, %s20, 3
          %s170 = smul.addr %s167, 4
          %s171 = sadd.s32 %s169, %s170
          %s172 = scalar_lea.vmem %s1, %s171
        $region28: #{tpu_custom_call.1} parent=19 // pred_fallthru
          _
      $region20: #{tpu_custom_call.1} parent=5 // pred_fallthru
        _
      %p173 = scmp.le.s32.totalorder 1, %s12
      %p174 = scmp.lt.s32.totalorder %s12, 9
      %p175 = pnand %p173, %p174
      %p176 = pneg %p175
      // Predicated region
      $region29: #{tpu_custom_call.1} parent=5 // pred_check
        _
      $region30: #{tpu_custom_call.1} parent=5 // pred_check_branch
        %178 = sbr.rel (%p175) target = $region32
      $region31: #{tpu_custom_call.1} parent=5 // pred_region
        %s179 = ssub.s32 %s12, 1
        %p180 = scmp.lt.s32.totalorder %s21, 1
        %s181 = scalar_select %p180, %s21, 1
        %p182 = scmp.lt.s32.totalorder %s22, 3
        %s183 = scalar_select %p182, %s22, 3
        %s184 = smul.addr %s183, 54
        %s185 = smul.addr %s181, 216
        %s186 = sadd.s32 %s184, %s185
        %s187 = smul.addr %s186, 8
        %s188 = scalar_lea.vmem %s0, %s187
        %p189 = pneg %p52
        %p190 = pneg %p49
        %p191 = scmp.lt.s32.totalorder %s21, 1
        %s192 = scalar_select %p191, %s21, 1
        %p193 = scmp.lt.s32.totalorder %s22, 3
        %s194 = scalar_select %p193, %s22, 3
        %s195 = smul.addr %s192, 4
        %s196 = sadd.s32 %s194, %s195
        %s197 = scalar_lea.vmem %s1, %s196
        %p198 = pneg %p80
        %p199 = pneg %p77
        %p200 = pneg %p101
        %p201 = pneg %p98
        %p202 = pneg %p129
        %p203 = pneg %p126
        %s204 = sand.u32 %s116, 1
        %s205 = scalar_lea.sflag [#allocation3], %s204
        %s206 = sand.u32 %s116, 1
        %s207 = smul.addr %s206, 256
        %s208 = scalar_lea.vmem [#allocation2], %s207
        %p209 = scmp.lt.s32.totalorder %s21, 1
        %s210 = scalar_select %p209, %s21, 1
        %p211 = scmp.lt.s32.totalorder %s22, 3
        %s212 = scalar_select %p211, %s22, 3
        %s213 = smul.addr %s212, 54
        %s214 = smul.addr %s210, 216
        %s215 = sadd.s32 %s213, %s214
        %s216 = smul.addr %s215, 8
        %s217 = scalar_lea.vmem %s0, %s216
        %p218 = scmp.lt.s32.totalorder %s21, 1
        %s219 = scalar_select %p218, %s21, 1
        %p220 = scmp.lt.s32.totalorder %s22, 3
        %s221 = scalar_select %p220, %s22, 3
        %s222 = smul.addr %s219, 4
        %s223 = sadd.s32 %s221, %s222
        %s224 = scalar_lea.vmem %s1, %s223
        %v225 = vld [vmem:[%s224] sm:$0x1]
        %v226 = vld [vmem:[%s217] sm:$0xff]
        %v227 = vld [vmem:[%s217 + $0x8] sm:$0xff]
        %v228 = vld [vmem:[%s217 + $0x10] sm:$0x3]
        %v229 = vld [vmem:[%s217 + $0x18] sm:$0xff]
        %v230 = vld [vmem:[%s217 + $0x20] sm:$0xff]
        %v231 = vld [vmem:[%s217 + $0x28] sm:$0x3]
        %v232 = vld [vmem:[%s217 + $0x30] sm:$0xff]
        %v233 = vld [vmem:[%s217 + $0x38] sm:$0xff]
        %v234 = vld [vmem:[%s217 + $0x40] sm:$0x3]
        %v235 = vld [vmem:[%s217 + $0x48] sm:$0xff]
        %v236 = vld [vmem:[%s217 + $0x50] sm:$0xff]
        %v237 = vld [vmem:[%s217 + $0x58] sm:$0x3]
        %v238 = vld [vmem:[%s217 + $0x60] sm:$0xff]
        %v239 = vld [vmem:[%s217 + $0x68] sm:$0xff]
        %v240 = vld [vmem:[%s217 + $0x70] sm:$0x3]
        %v241 = vld [vmem:[%s217 + $0x78] sm:$0xff]
        %v242 = vld [vmem:[%s217 + $0x80] sm:$0xff]
        %v243 = vld [vmem:[%s217 + $0x88] sm:$0x3]
        %v244 = vld [vmem:[%s217 + $0x90] sm:$0xff]
        %v245 = vld [vmem:[%s217 + $0x98] sm:$0xff]
        %v246 = vld [vmem:[%s217 + $0xa0] sm:$0x3]
        %v247 = vld [vmem:[%s217 + $0xa8] sm:$0xff]
        %v248 = vld [vmem:[%s217 + $0xb0] sm:$0xff]
        %v249 = vld [vmem:[%s217 + $0xb8] sm:$0x3]
        %v250 = vld [vmem:[%s217 + $0xc0] sm:$0xff]
        %v251 = vld [vmem:[%s217 + $0xc8] sm:$0xff]
        %v252 = vld [vmem:[%s217 + $0xd0] sm:$0x3]
        %v253 = vld [vmem:[%s217 + $0xd8] sm:$0xff]
        %v254 = vld [vmem:[%s217 + $0xe0] sm:$0xff]
        %v255 = vld [vmem:[%s217 + $0xe8] sm:$0x3]
        %v256 = vld [vmem:[%s217 + $0xf0] sm:$0xff]
        %v257 = vld [vmem:[%s217 + $0xf8] sm:$0xff]
        %v258 = vld [vmem:[%s217 + $0x100] sm:$0x3]
        %v259 = vld [vmem:[%s217 + $0x108] sm:$0xff]
        %v260 = vld [vmem:[%s217 + $0x110] sm:$0xff]
        %v261 = vld [vmem:[%s217 + $0x118] sm:$0x3]
        %v262 = vld [vmem:[%s217 + $0x120] sm:$0xff]
        %v263 = vld [vmem:[%s217 + $0x128] sm:$0xff]
        %v264 = vld [vmem:[%s217 + $0x130] sm:$0x3]
        %v265 = vld [vmem:[%s217 + $0x138] sm:$0xff]
        %v266 = vld [vmem:[%s217 + $0x140] sm:$0xff]
        %v267 = vld [vmem:[%s217 + $0x148] sm:$0x3]
        %v268 = vld [vmem:[%s217 + $0x150] sm:$0xff]
        %v269 = vld [vmem:[%s217 + $0x158] sm:$0xff]
        %v270 = vld [vmem:[%s217 + $0x160] sm:$0x3]
        %v271 = vld [vmem:[%s217 + $0x168] sm:$0xff]
        %v272 = vld [vmem:[%s217 + $0x170] sm:$0xff]
        %v273 = vld [vmem:[%s217 + $0x178] sm:$0x3]
        %v274 = vld [vmem:[%s217 + $0x180] sm:$0xff]
        %v275 = vld [vmem:[%s217 + $0x188] sm:$0xff]
        %v276 = vld [vmem:[%s217 + $0x190] sm:$0x3]
        %v277 = vld [vmem:[%s217 + $0x198] sm:$0xff]
        %v278 = vld [vmem:[%s217 + $0x1a0] sm:$0xff]
        %v279 = vld [vmem:[%s217 + $0x1a8] sm:$0x3]
        %v281 = vperm.slane %v225, 0
        %v283 = vmul.f32 %v226, %v281
        %v284 = vmul.f32 %v227, %v281
        %v285 = vmul.f32 %v228, %v281
        %v286 = vmul.f32 %v229, %v281
        %v287 = vmul.f32 %v230, %v281
        %v288 = vmul.f32 %v231, %v281
        %v289 = vmul.f32 %v232, %v281
        %v290 = vmul.f32 %v233, %v281
        %v291 = vmul.f32 %v234, %v281
        %v292 = vmul.f32 %v235, %v281
        %v293 = vmul.f32 %v236, %v281
        %v294 = vmul.f32 %v237, %v281
        %v295 = vmul.f32 %v238, %v281
        %v296 = vmul.f32 %v239, %v281
        %v297 = vmul.f32 %v240, %v281
        %v298 = vmul.f32 %v241, %v281
        %v299 = vmul.f32 %v242, %v281
        %v300 = vmul.f32 %v243, %v281
        %v301 = vmul.f32 %v244, %v281
        %v302 = vmul.f32 %v245, %v281
        %v303 = vmul.f32 %v246, %v281
        %v304 = vmul.f32 %v247, %v281
        %v305 = vmul.f32 %v248, %v281
        %v306 = vmul.f32 %v249, %v281
        %v307 = vmul.f32 %v250, %v281
        %v308 = vmul.f32 %v251, %v281
        %v309 = vmul.f32 %v252, %v281
        %v310 = vmul.f32 %v253, %v281
        %v311 = vmul.f32 %v254, %v281
        %v312 = vmul.f32 %v255, %v281
        %v313 = vmul.f32 %v256, %v281
        %v314 = vmul.f32 %v257, %v281
        %v315 = vmul.f32 %v258, %v281
        %v316 = vmul.f32 %v259, %v281
        %v317 = vmul.f32 %v260, %v281
        %v318 = vmul.f32 %v261, %v281
        %v319 = vmul.f32 %v262, %v281
        %v320 = vmul.f32 %v263, %v281
        %v321 = vmul.f32 %v264, %v281
        %v322 = vmul.f32 %v265, %v281
        %v323 = vmul.f32 %v266, %v281
        %v324 = vmul.f32 %v267, %v281
        %v325 = vmul.f32 %v268, %v281
        %v326 = vmul.f32 %v269, %v281
        %v327 = vmul.f32 %v270, %v281
        %v328 = vmul.f32 %v271, %v281
        %v329 = vmul.f32 %v272, %v281
        %v330 = vmul.f32 %v273, %v281
        %v331 = vmul.f32 %v274, %v281
        %v332 = vmul.f32 %v275, %v281
        %v333 = vmul.f32 %v276, %v281
        %v334 = vmul.f32 %v277, %v281
        %v335 = vmul.f32 %v278, %v281
        %v336 = vmul.f32 %v279, %v281
        %v337 = vld [vmem:[%s2] sm:$0xff]
        %v338 = vld [vmem:[%s2 + $0x8] sm:$0xff]
        %vm387 = vcmask 1046528
        %v388 = vrot.slane %v283, 1
        %v389 = vrot.slane %v284, 1
        %v390 = vsel %vm387, %v388, %v389
        %v391 = vrot.slane %v285, 1
        %v392 = vsel %vm387, %v389, %v391
        %v393 = vrot.slane %v286, 1
        %v394 = vrot.slane %v287, 1
        %v395 = vsel %vm387, %v393, %v394
        %v396 = vrot.slane %v288, 1
        %v397 = vsel %vm387, %v394, %v396
        %v398 = vrot.slane %v289, 1
        %v399 = vrot.slane %v290, 1
        %v400 = vsel %vm387, %v398, %v399
        %v401 = vrot.slane %v291, 1
        %v402 = vsel %vm387, %v399, %v401
        %v403 = vrot.slane %v292, 1
        %v404 = vrot.slane %v293, 1
        %v405 = vsel %vm387, %v403, %v404
        %v406 = vrot.slane %v294, 1
        %v407 = vsel %vm387, %v404, %v406
        %v408 = vrot.slane %v295, 1
        %v409 = vrot.slane %v296, 1
        %v410 = vsel %vm387, %v408, %v409
        %v411 = vrot.slane %v297, 1
        %v412 = vsel %vm387, %v409, %v411
        %v413 = vrot.slane %v298, 1
        %v414 = vrot.slane %v299, 1
        %v415 = vsel %vm387, %v413, %v414
        %v416 = vrot.slane %v300, 1
        %v417 = vsel %vm387, %v414, %v416
        %v418 = vrot.slane %v301, 1
        %v419 = vrot.slane %v302, 1
        %v420 = vsel %vm387, %v418, %v419
        %v421 = vrot.slane %v303, 1
        %v422 = vsel %vm387, %v419, %v421
        %v423 = vrot.slane %v304, 1
        %v424 = vrot.slane %v305, 1
        %v425 = vsel %vm387, %v423, %v424
        %v426 = vrot.slane %v306, 1
        %v427 = vsel %vm387, %v424, %v426
        %v428 = vrot.slane %v307, 1
        %v429 = vrot.slane %v308, 1
        %v430 = vsel %vm387, %v428, %v429
        %v431 = vrot.slane %v309, 1
        %v432 = vsel %vm387, %v429, %v431
        %v433 = vrot.slane %v310, 1
        %v434 = vrot.slane %v311, 1
        %v435 = vsel %vm387, %v433, %v434
        %v436 = vrot.slane %v312, 1
        %v437 = vsel %vm387, %v434, %v436
        %v438 = vrot.slane %v313, 1
        %v439 = vrot.slane %v314, 1
        %v440 = vsel %vm387, %v438, %v439
        %v441 = vrot.slane %v315, 1
        %v442 = vsel %vm387, %v439, %v441
        %v443 = vrot.slane %v316, 1
        %v444 = vrot.slane %v317, 1
        %v445 = vsel %vm387, %v443, %v444
        %v446 = vrot.slane %v318, 1
        %v447 = vsel %vm387, %v444, %v446
        %v448 = vrot.slane %v319, 1
        %v449 = vrot.slane %v320, 1
        %v450 = vsel %vm387, %v448, %v449
        %v451 = vrot.slane %v321, 1
        %v452 = vsel %vm387, %v449, %v451
        %v453 = vrot.slane %v322, 1
        %v454 = vrot.slane %v323, 1
        %v455 = vsel %vm387, %v453, %v454
        %v456 = vrot.slane %v324, 1
        %v457 = vsel %vm387, %v454, %v456
        %v458 = vrot.slane %v325, 1
        %v459 = vrot.slane %v326, 1
        %v460 = vsel %vm387, %v458, %v459
        %v461 = vrot.slane %v327, 1
        %v462 = vsel %vm387, %v459, %v461
        %v463 = vrot.slane %v328, 1
        %v464 = vrot.slane %v329, 1
        %v465 = vsel %vm387, %v463, %v464
        %v466 = vrot.slane %v330, 1
        %v467 = vsel %vm387, %v464, %v466
        %s468 = scalar_lea.vmem %s2, 16
        %v469 = vld [vmem:[%s468] sm:$0xff]
        %v470 = vld [vmem:[%s468 + $0x8] sm:$0xff]
        %vm471 = vcmask 130048
        %v472 = vsel %vm471, %v390, 0
        %v474 = vsel %vm471, %v392, 0
        %v476 = vsel %vm471, %v395, 0
        %v478 = vsel %vm471, %v397, 0
        %v480 = vsel %vm471, %v400, 0
        %v482 = vsel %vm471, %v402, 0
        %v484 = vsel %vm471, %v405, 0
        %v486 = vsel %vm471, %v407, 0
        %v488 = vsel %vm471, %v410, 0
        %v490 = vsel %vm471, %v412, 0
        %v492 = vsel %vm471, %v415, 0
        %v494 = vsel %vm471, %v417, 0
        %v496 = vsel %vm471, %v420, 0
        %v498 = vsel %vm471, %v422, 0
        %v500 = vsel %vm471, %v425, 0
        %v502 = vsel %vm471, %v427, 0
        %v504 = vsel %vm471, %v430, 0
        %v506 = vsel %vm471, %v432, 0
        %v508 = vsel %vm471, %v435, 0
        %v510 = vsel %vm471, %v437, 0
        %v512 = vsel %vm471, %v440, 0
        %v514 = vsel %vm471, %v442, 0
        %v516 = vsel %vm471, %v445, 0
        %v518 = vsel %vm471, %v447, 0
        %v520 = vsel %vm471, %v450, 0
        %v522 = vsel %vm471, %v452, 0
        %v524 = vsel %vm471, %v455, 0
        %v526 = vsel %vm471, %v457, 0
        %v528 = vsel %vm471, %v460, 0
        %v530 = vsel %vm471, %v462, 0
        %v532 = vsel %vm471, %v465, 0
        %v534 = vsel %vm471, %v467, 0
        %536 = vmatpush.msra.mxu0 0.0
        %537 = vmatpush.msra.mxu0 0.0
        %538 = vmatpush.msra.mxu0 0.0
        %539 = vmatpush.msra.mxu0 0.0
        %540 = vmatpush.msra.mxu0 0.0
        %541 = vmatpush.msra.mxu0 0.0
        %542 = vmatpush.msra.mxu0 0.0
        %543 = vmatpush.msra.mxu0 0.0
        %544 = vmatpush.msra.mxu0 0.0
        %545 = vmatpush.msra.mxu0 0.0
        %546 = vmatpush.msra.mxu0 0.0
        %547 = vmatpush.msra.mxu0 0.0
        %548 = vmatpush.msra.mxu0 0.0
        %549 = vmatpush.msra.mxu0 0.0
        %550 = vmatpush.msra.mxu0 %v470
        %551 = vmatpush.msra.mxu0 %v469
        %552 = vmatmul.f32.gmra.mxu0 %v472
        %v553 = vpop.f32.mrf.mxu0
        %v554 = vadd.f32 0.0, %v553
        %555 = vmatmul.f32.gmra.mxu0 %v474
        %v556 = vpop.f32.mrf.mxu0
        %v557 = vadd.f32 0.0, %v556
        %558 = vmatmul.f32.gmra.mxu0 %v476
        %v559 = vpop.f32.mrf.mxu0
        %v560 = vadd.f32 0.0, %v559
        %561 = vmatmul.f32.gmra.mxu0 %v478
        %v562 = vpop.f32.mrf.mxu0
        %v563 = vadd.f32 0.0, %v562
        %564 = vmatmul.f32.gmra.mxu0 %v480
        %v565 = vpop.f32.mrf.mxu0
        %v566 = vadd.f32 0.0, %v565
        %567 = vmatmul.f32.gmra.mxu0 %v482
        %v568 = vpop.f32.mrf.mxu0
        %v569 = vadd.f32 0.0, %v568
        %570 = vmatmul.f32.gmra.mxu0 %v484
        %v571 = vpop.f32.mrf.mxu0
        %v572 = vadd.f32 0.0, %v571
        %573 = vmatmul.f32.gmra.mxu0 %v486
        %v574 = vpop.f32.mrf.mxu0
        %v575 = vadd.f32 0.0, %v574
        %576 = vmatmul.f32.gmra.mxu0 %v488
        %v577 = vpop.f32.mrf.mxu0
        %v578 = vadd.f32 0.0, %v577
        %579 = vmatmul.f32.gmra.mxu0 %v490
        %v580 = vpop.f32.mrf.mxu0
        %v581 = vadd.f32 0.0, %v580
        %582 = vmatmul.f32.gmra.mxu0 %v492
        %v583 = vpop.f32.mrf.mxu0
        %v584 = vadd.f32 0.0, %v583
        %585 = vmatmul.f32.gmra.mxu0 %v494
        %v586 = vpop.f32.mrf.mxu0
        %v587 = vadd.f32 0.0, %v586
        %588 = vmatmul.f32.gmra.mxu0 %v496
        %v589 = vpop.f32.mrf.mxu0
        %v590 = vadd.f32 0.0, %v589
        %591 = vmatmul.f32.gmra.mxu0 %v498
        %v592 = vpop.f32.mrf.mxu0
        %v593 = vadd.f32 0.0, %v592
        %594 = vmatmul.f32.gmra.mxu0 %v500
        %v595 = vpop.f32.mrf.mxu0
        %v596 = vadd.f32 0.0, %v595
        %597 = vmatmul.f32.gmra.mxu0 %v502
        %v598 = vpop.f32.mrf.mxu0
        %v599 = vadd.f32 0.0, %v598
        %600 = vmatmul.f32.gmra.mxu0 %v504
        %v601 = vpop.f32.mrf.mxu0
        %v602 = vadd.f32 0.0, %v601
        %603 = vmatmul.f32.gmra.mxu0 %v506
        %v604 = vpop.f32.mrf.mxu0
        %v605 = vadd.f32 0.0, %v604
        %606 = vmatmul.f32.gmra.mxu0 %v508
        %v607 = vpop.f32.mrf.mxu0
        %v608 = vadd.f32 0.0, %v607
        %609 = vmatmul.f32.gmra.mxu0 %v510
        %v610 = vpop.f32.mrf.mxu0
        %v611 = vadd.f32 0.0, %v610
        %612 = vmatmul.f32.gmra.mxu0 %v512
        %v613 = vpop.f32.mrf.mxu0
        %v614 = vadd.f32 0.0, %v613
        %615 = vmatmul.f32.gmra.mxu0 %v514
        %v616 = vpop.f32.mrf.mxu0
        %v617 = vadd.f32 0.0, %v616
        %618 = vmatmul.f32.gmra.mxu0 %v516
        %v619 = vpop.f32.mrf.mxu0
        %v620 = vadd.f32 0.0, %v619
        %621 = vmatmul.f32.gmra.mxu0 %v518
        %v622 = vpop.f32.mrf.mxu0
        %v623 = vadd.f32 0.0, %v622
        %624 = vmatmul.f32.gmra.mxu0 %v520
        %v625 = vpop.f32.mrf.mxu0
        %v626 = vadd.f32 0.0, %v625
        %627 = vmatmul.f32.gmra.mxu0 %v522
        %v628 = vpop.f32.mrf.mxu0
        %v629 = vadd.f32 0.0, %v628
        %630 = vmatmul.f32.gmra.mxu0 %v524
        %v631 = vpop.f32.mrf.mxu0
        %v632 = vadd.f32 0.0, %v631
        %633 = vmatmul.f32.gmra.mxu0 %v526
        %v634 = vpop.f32.mrf.mxu0
        %v635 = vadd.f32 0.0, %v634
        %636 = vmatmul.f32.gmra.mxu0 %v528
        %v637 = vpop.f32.mrf.mxu0
        %v638 = vadd.f32 0.0, %v637
        %639 = vmatmul.f32.gmra.mxu0 %v530
        %v640 = vpop.f32.mrf.mxu0
        %v641 = vadd.f32 0.0, %v640
        %642 = vmatmul.f32.gmra.mxu0 %v532
        %v643 = vpop.f32.mrf.mxu0
        %v644 = vadd.f32 0.0, %v643
        %645 = vmatmul.f32.gmra.mxu0 %v534
        %v646 = vpop.f32.mrf.mxu0
        %v647 = vadd.f32 0.0, %v646
        %648 = vdwg.mxu0
        %v649 = vsel %vm471, %v283, 0
        %v651 = vsel %vm471, %v284, 0
        %v653 = vsel %vm471, %v286, 0
        %v655 = vsel %vm471, %v287, 0
        %v657 = vsel %vm471, %v289, 0
        %v659 = vsel %vm471, %v290, 0
        %v661 = vsel %vm471, %v292, 0
        %v663 = vsel %vm471, %v293, 0
        %v665 = vsel %vm471, %v295, 0
        %v667 = vsel %vm471, %v296, 0
        %v669 = vsel %vm471, %v298, 0
        %v671 = vsel %vm471, %v299, 0
        %v673 = vsel %vm471, %v301, 0
        %v675 = vsel %vm471, %v302, 0
        %v677 = vsel %vm471, %v304, 0
        %v679 = vsel %vm471, %v305, 0
        %v681 = vsel %vm471, %v307, 0
        %v683 = vsel %vm471, %v308, 0
        %v685 = vsel %vm471, %v310, 0
        %v687 = vsel %vm471, %v311, 0
        %v689 = vsel %vm471, %v313, 0
        %v691 = vsel %vm471, %v314, 0
        %v693 = vsel %vm471, %v316, 0
        %v695 = vsel %vm471, %v317, 0
        %v697 = vsel %vm471, %v319, 0
        %v699 = vsel %vm471, %v320, 0
        %v701 = vsel %vm471, %v322, 0
        %v703 = vsel %vm471, %v323, 0
        %v705 = vsel %vm471, %v325, 0
        %v707 = vsel %vm471, %v326, 0
        %v709 = vsel %vm471, %v328, 0
        %v711 = vsel %vm471, %v329, 0
        %713 = vmatpush.msra.mxu0 0.0
        %714 = vmatpush.msra.mxu0 0.0
        %715 = vmatpush.msra.mxu0 0.0
        %716 = vmatpush.msra.mxu0 0.0
        %717 = vmatpush.msra.mxu0 0.0
        %718 = vmatpush.msra.mxu0 0.0
        %719 = vmatpush.msra.mxu0 0.0
        %720 = vmatpush.msra.mxu0 0.0
        %721 = vmatpush.msra.mxu0 0.0
        %722 = vmatpush.msra.mxu0 0.0
        %723 = vmatpush.msra.mxu0 0.0
        %724 = vmatpush.msra.mxu0 0.0
        %725 = vmatpush.msra.mxu0 0.0
        %726 = vmatpush.msra.mxu0 0.0
        %727 = vmatpush.msra.mxu0 %v338
        %728 = vmatpush.msra.mxu0 %v337
        %729 = vmatmul.f32.gmra.mxu0 %v649
        %v730 = vpop.f32.mrf.mxu0
        %v731 = vadd.f32 %v554, %v730
        %732 = vmatmul.f32.gmra.mxu0 %v651
        %v733 = vpop.f32.mrf.mxu0
        %v734 = vadd.f32 %v557, %v733
        %735 = vmatmul.f32.gmra.mxu0 %v653
        %v736 = vpop.f32.mrf.mxu0
        %v737 = vadd.f32 %v560, %v736
        %738 = vmatmul.f32.gmra.mxu0 %v655
        %v739 = vpop.f32.mrf.mxu0
        %v740 = vadd.f32 %v563, %v739
        %741 = vmatmul.f32.gmra.mxu0 %v657
        %v742 = vpop.f32.mrf.mxu0
        %v743 = vadd.f32 %v566, %v742
        %744 = vmatmul.f32.gmra.mxu0 %v659
        %v745 = vpop.f32.mrf.mxu0
        %v746 = vadd.f32 %v569, %v745
        %747 = vmatmul.f32.gmra.mxu0 %v661
        %v748 = vpop.f32.mrf.mxu0
        %v749 = vadd.f32 %v572, %v748
        %750 = vmatmul.f32.gmra.mxu0 %v663
        %v751 = vpop.f32.mrf.mxu0
        %v752 = vadd.f32 %v575, %v751
        %753 = vmatmul.f32.gmra.mxu0 %v665
        %v754 = vpop.f32.mrf.mxu0
        %v755 = vadd.f32 %v578, %v754
        %756 = vmatmul.f32.gmra.mxu0 %v667
        %v757 = vpop.f32.mrf.mxu0
        %v758 = vadd.f32 %v581, %v757
        %759 = vmatmul.f32.gmra.mxu0 %v669
        %v760 = vpop.f32.mrf.mxu0
        %v761 = vadd.f32 %v584, %v760
        %762 = vmatmul.f32.gmra.mxu0 %v671
        %v763 = vpop.f32.mrf.mxu0
        %v764 = vadd.f32 %v587, %v763
        %765 = vmatmul.f32.gmra.mxu0 %v673
        %v766 = vpop.f32.mrf.mxu0
        %v767 = vadd.f32 %v590, %v766
        %768 = vmatmul.f32.gmra.mxu0 %v675
        %v769 = vpop.f32.mrf.mxu0
        %v770 = vadd.f32 %v593, %v769
        %771 = vmatmul.f32.gmra.mxu0 %v677
        %v772 = vpop.f32.mrf.mxu0
        %v773 = vadd.f32 %v596, %v772
        %774 = vmatmul.f32.gmra.mxu0 %v679
        %v775 = vpop.f32.mrf.mxu0
        %v776 = vadd.f32 %v599, %v775
        %777 = vmatmul.f32.gmra.mxu0 %v681
        %v778 = vpop.f32.mrf.mxu0
        %v779 = vadd.f32 %v602, %v778
        %780 = vmatmul.f32.gmra.mxu0 %v683
        %v781 = vpop.f32.mrf.mxu0
        %v782 = vadd.f32 %v605, %v781
        %783 = vmatmul.f32.gmra.mxu0 %v685
        %v784 = vpop.f32.mrf.mxu0
        %v785 = vadd.f32 %v608, %v784
        %786 = vmatmul.f32.gmra.mxu0 %v687
        %v787 = vpop.f32.mrf.mxu0
        %v788 = vadd.f32 %v611, %v787
        %789 = vmatmul.f32.gmra.mxu0 %v689
        %v790 = vpop.f32.mrf.mxu0
        %v791 = vadd.f32 %v614, %v790
        %792 = vmatmul.f32.gmra.mxu0 %v691
        %v793 = vpop.f32.mrf.mxu0
        %v794 = vadd.f32 %v617, %v793
        %795 = vmatmul.f32.gmra.mxu0 %v693
        %v796 = vpop.f32.mrf.mxu0
        %v797 = vadd.f32 %v620, %v796
        %798 = vmatmul.f32.gmra.mxu0 %v695
        %v799 = vpop.f32.mrf.mxu0
        %v800 = vadd.f32 %v623, %v799
        %801 = vmatmul.f32.gmra.mxu0 %v697
        %v802 = vpop.f32.mrf.mxu0
        %v803 = vadd.f32 %v626, %v802
        %804 = vmatmul.f32.gmra.mxu0 %v699
        %v805 = vpop.f32.mrf.mxu0
        %v806 = vadd.f32 %v629, %v805
        %807 = vmatmul.f32.gmra.mxu0 %v701
        %v808 = vpop.f32.mrf.mxu0
        %v809 = vadd.f32 %v632, %v808
        %810 = vmatmul.f32.gmra.mxu0 %v703
        %v811 = vpop.f32.mrf.mxu0
        %v812 = vadd.f32 %v635, %v811
        %813 = vmatmul.f32.gmra.mxu0 %v705
        %v814 = vpop.f32.mrf.mxu0
        %v815 = vadd.f32 %v638, %v814
        %816 = vmatmul.f32.gmra.mxu0 %v707
        %v817 = vpop.f32.mrf.mxu0
        %v818 = vadd.f32 %v641, %v817
        %819 = vmatmul.f32.gmra.mxu0 %v709
        %v820 = vpop.f32.mrf.mxu0
        %v821 = vadd.f32 %v644, %v820
        %822 = vmatmul.f32.gmra.mxu0 %v711
        %v823 = vpop.f32.mrf.mxu0
        %v824 = vadd.f32 %v647, %v823
        %825 = vdwg.mxu0
        %vm826 = vcmask 1045504
        %v827 = vrot.slane %v283, 2
        %v828 = vrot.slane %v284, 2
        %v829 = vsel %vm826, %v827, %v828
        %v830 = vrot.slane %v285, 2
        %v831 = vsel %vm826, %v828, %v830
        %v832 = vrot.slane %v286, 2
        %v833 = vrot.slane %v287, 2
        %v834 = vsel %vm826, %v832, %v833
        %v835 = vrot.slane %v288, 2
        %v836 = vsel %vm826, %v833, %v835
        %v837 = vrot.slane %v289, 2
        %v838 = vrot.slane %v290, 2
        %v839 = vsel %vm826, %v837, %v838
        %v840 = vrot.slane %v291, 2
        %v841 = vsel %vm826, %v838, %v840
        %v842 = vrot.slane %v292, 2
        %v843 = vrot.slane %v293, 2
        %v844 = vsel %vm826, %v842, %v843
        %v845 = vrot.slane %v294, 2
        %v846 = vsel %vm826, %v843, %v845
        %v847 = vrot.slane %v295, 2
        %v848 = vrot.slane %v296, 2
        %v849 = vsel %vm826, %v847, %v848
        %v850 = vrot.slane %v297, 2
        %v851 = vsel %vm826, %v848, %v850
        %v852 = vrot.slane %v298, 2
        %v853 = vrot.slane %v299, 2
        %v854 = vsel %vm826, %v852, %v853
        %v855 = vrot.slane %v300, 2
        %v856 = vsel %vm826, %v853, %v855
        %v857 = vrot.slane %v301, 2
        %v858 = vrot.slane %v302, 2
        %v859 = vsel %vm826, %v857, %v858
        %v860 = vrot.slane %v303, 2
        %v861 = vsel %vm826, %v858, %v860
        %v862 = vrot.slane %v304, 2
        %v863 = vrot.slane %v305, 2
        %v864 = vsel %vm826, %v862, %v863
        %v865 = vrot.slane %v306, 2
        %v866 = vsel %vm826, %v863, %v865
        %v867 = vrot.slane %v307, 2
        %v868 = vrot.slane %v308, 2
        %v869 = vsel %vm826, %v867, %v868
        %v870 = vrot.slane %v309, 2
        %v871 = vsel %vm826, %v868, %v870
        %v872 = vrot.slane %v310, 2
        %v873 = vrot.slane %v311, 2
        %v874 = vsel %vm826, %v872, %v873
        %v875 = vrot.slane %v312, 2
        %v876 = vsel %vm826, %v873, %v875
        %v877 = vrot.slane %v313, 2
        %v878 = vrot.slane %v314, 2
        %v879 = vsel %vm826, %v877, %v878
        %v880 = vrot.slane %v315, 2
        %v881 = vsel %vm826, %v878, %v880
        %v882 = vrot.slane %v316, 2
        %v883 = vrot.slane %v317, 2
        %v884 = vsel %vm826, %v882, %v883
        %v885 = vrot.slane %v318, 2
        %v886 = vsel %vm826, %v883, %v885
        %v887 = vrot.slane %v319, 2
        %v888 = vrot.slane %v320, 2
        %v889 = vsel %vm826, %v887, %v888
        %v890 = vrot.slane %v321, 2
        %v891 = vsel %vm826, %v888, %v890
        %v892 = vrot.slane %v322, 2
        %v893 = vrot.slane %v323, 2
        %v894 = vsel %vm826, %v892, %v893
        %v895 = vrot.slane %v324, 2
        %v896 = vsel %vm826, %v893, %v895
        %v897 = vrot.slane %v325, 2
        %v898 = vrot.slane %v326, 2
        %v899 = vsel %vm826, %v897, %v898
        %v900 = vrot.slane %v327, 2
        %v901 = vsel %vm826, %v898, %v900
        %v902 = vrot.slane %v328, 2
        %v903 = vrot.slane %v329, 2
        %v904 = vsel %vm826, %v902, %v903
        %v905 = vrot.slane %v330, 2
        %v906 = vsel %vm826, %v903, %v905
        %s907 = scalar_lea.vmem %s2, 32
        %v908 = vld [vmem:[%s907] sm:$0xff]
        %v909 = vld [vmem:[%s907 + $0x8] sm:$0xff]
        %v910 = vsel %vm471, %v829, 0
        %v912 = vsel %vm471, %v831, 0
        %v914 = vsel %vm471, %v834, 0
        %v916 = vsel %vm471, %v836, 0
        %v918 = vsel %vm471, %v839, 0
        %v920 = vsel %vm471, %v841, 0
        %v922 = vsel %vm471, %v844, 0
        %v924 = vsel %vm471, %v846, 0
        %v926 = vsel %vm471, %v849, 0
        %v928 = vsel %vm471, %v851, 0
        %v930 = vsel %vm471, %v854, 0
        %v932 = vsel %vm471, %v856, 0
        %v934 = vsel %vm471, %v859, 0
        %v936 = vsel %vm471, %v861, 0
        %v938 = vsel %vm471, %v864, 0
        %v940 = vsel %vm471, %v866, 0
        %v942 = vsel %vm471, %v869, 0
        %v944 = vsel %vm471, %v871, 0
        %v946 = vsel %vm471, %v874, 0
        %v948 = vsel %vm471, %v876, 0
        %v950 = vsel %vm471, %v879, 0
        %v952 = vsel %vm471, %v881, 0
        %v954 = vsel %vm471, %v884, 0
        %v956 = vsel %vm471, %v886, 0
        %v958 = vsel %vm471, %v889, 0
        %v960 = vsel %vm471, %v891, 0
        %v962 = vsel %vm471, %v894, 0
        %v964 = vsel %vm471, %v896, 0
        %v966 = vsel %vm471, %v899, 0
        %v968 = vsel %vm471, %v901, 0
        %v970 = vsel %vm471, %v904, 0
        %v972 = vsel %vm471, %v906, 0
        %974 = vmatpush.msra.mxu0 0.0
        %975 = vmatpush.msra.mxu0 0.0
        %976 = vmatpush.msra.mxu0 0.0
        %977 = vmatpush.msra.mxu0 0.0
        %978 = vmatpush.msra.mxu0 0.0
        %979 = vmatpush.msra.mxu0 0.0
        %980 = vmatpush.msra.mxu0 0.0
        %981 = vmatpush.msra.mxu0 0.0
        %982 = vmatpush.msra.mxu0 0.0
        %983 = vmatpush.msra.mxu0 0.0
        %984 = vmatpush.msra.mxu0 0.0
        %985 = vmatpush.msra.mxu0 0.0
        %986 = vmatpush.msra.mxu0 0.0
        %987 = vmatpush.msra.mxu0 0.0
        %988 = vmatpush.msra.mxu0 %v909
        %989 = vmatpush.msra.mxu0 %v908
        %990 = vmatmul.f32.gmra.mxu0 %v910
        %v991 = vpop.f32.mrf.mxu0
        %v992 = vadd.f32 0.0, %v991
        %993 = vmatmul.f32.gmra.mxu0 %v912
        %v994 = vpop.f32.mrf.mxu0
        %v995 = vadd.f32 0.0, %v994
        %996 = vmatmul.f32.gmra.mxu0 %v914
        %v997 = vpop.f32.mrf.mxu0
        %v998 = vadd.f32 0.0, %v997
        %999 = vmatmul.f32.gmra.mxu0 %v916
        %v1000 = vpop.f32.mrf.mxu0
        %v1001 = vadd.f32 0.0, %v1000
        %1002 = vmatmul.f32.gmra.mxu0 %v918
        %v1003 = vpop.f32.mrf.mxu0
        %v1004 = vadd.f32 0.0, %v1003
        %1005 = vmatmul.f32.gmra.mxu0 %v920
        %v1006 = vpop.f32.mrf.mxu0
        %v1007 = vadd.f32 0.0, %v1006
        %1008 = vmatmul.f32.gmra.mxu0 %v922
        %v1009 = vpop.f32.mrf.mxu0
        %v1010 = vadd.f32 0.0, %v1009
        %1011 = vmatmul.f32.gmra.mxu0 %v924
        %v1012 = vpop.f32.mrf.mxu0
        %v1013 = vadd.f32 0.0, %v1012
        %1014 = vmatmul.f32.gmra.mxu0 %v926
        %v1015 = vpop.f32.mrf.mxu0
        %v1016 = vadd.f32 0.0, %v1015
        %1017 = vmatmul.f32.gmra.mxu0 %v928
        %v1018 = vpop.f32.mrf.mxu0
        %v1019 = vadd.f32 0.0, %v1018
        %1020 = vmatmul.f32.gmra.mxu0 %v930
        %v1021 = vpop.f32.mrf.mxu0
        %v1022 = vadd.f32 0.0, %v1021
        %1023 = vmatmul.f32.gmra.mxu0 %v932
        %v1024 = vpop.f32.mrf.mxu0
        %v1025 = vadd.f32 0.0, %v1024
        %1026 = vmatmul.f32.gmra.mxu0 %v934
        %v1027 = vpop.f32.mrf.mxu0
        %v1028 = vadd.f32 0.0, %v1027
        %1029 = vmatmul.f32.gmra.mxu0 %v936
        %v1030 = vpop.f32.mrf.mxu0
        %v1031 = vadd.f32 0.0, %v1030
        %1032 = vmatmul.f32.gmra.mxu0 %v938
        %v1033 = vpop.f32.mrf.mxu0
        %v1034 = vadd.f32 0.0, %v1033
        %1035 = vmatmul.f32.gmra.mxu0 %v940
        %v1036 = vpop.f32.mrf.mxu0
        %v1037 = vadd.f32 0.0, %v1036
        %1038 = vmatmul.f32.gmra.mxu0 %v942
        %v1039 = vpop.f32.mrf.mxu0
        %v1040 = vadd.f32 0.0, %v1039
        %1041 = vmatmul.f32.gmra.mxu0 %v944
        %v1042 = vpop.f32.mrf.mxu0
        %v1043 = vadd.f32 0.0, %v1042
        %1044 = vmatmul.f32.gmra.mxu0 %v946
        %v1045 = vpop.f32.mrf.mxu0
        %v1046 = vadd.f32 0.0, %v1045
        %1047 = vmatmul.f32.gmra.mxu0 %v948
        %v1048 = vpop.f32.mrf.mxu0
        %v1049 = vadd.f32 0.0, %v1048
        %1050 = vmatmul.f32.gmra.mxu0 %v950
        %v1051 = vpop.f32.mrf.mxu0
        %v1052 = vadd.f32 0.0, %v1051
        %1053 = vmatmul.f32.gmra.mxu0 %v952
        %v1054 = vpop.f32.mrf.mxu0
        %v1055 = vadd.f32 0.0, %v1054
        %1056 = vmatmul.f32.gmra.mxu0 %v954
        %v1057 = vpop.f32.mrf.mxu0
        %v1058 = vadd.f32 0.0, %v1057
        %1059 = vmatmul.f32.gmra.mxu0 %v956
        %v1060 = vpop.f32.mrf.mxu0
        %v1061 = vadd.f32 0.0, %v1060
        %1062 = vmatmul.f32.gmra.mxu0 %v958
        %v1063 = vpop.f32.mrf.mxu0
        %v1064 = vadd.f32 0.0, %v1063
        %1065 = vmatmul.f32.gmra.mxu0 %v960
        %v1066 = vpop.f32.mrf.mxu0
        %v1067 = vadd.f32 0.0, %v1066
        %1068 = vmatmul.f32.gmra.mxu0 %v962
        %v1069 = vpop.f32.mrf.mxu0
        %v1070 = vadd.f32 0.0, %v1069
        %1071 = vmatmul.f32.gmra.mxu0 %v964
        %v1072 = vpop.f32.mrf.mxu0
        %v1073 = vadd.f32 0.0, %v1072
        %1074 = vmatmul.f32.gmra.mxu0 %v966
        %v1075 = vpop.f32.mrf.mxu0
        %v1076 = vadd.f32 0.0, %v1075
        %1077 = vmatmul.f32.gmra.mxu0 %v968
        %v1078 = vpop.f32.mrf.mxu0
        %v1079 = vadd.f32 0.0, %v1078
        %1080 = vmatmul.f32.gmra.mxu0 %v970
        %v1081 = vpop.f32.mrf.mxu0
        %v1082 = vadd.f32 0.0, %v1081
        %1083 = vmatmul.f32.gmra.mxu0 %v972
        %v1084 = vpop.f32.mrf.mxu0
        %v1085 = vadd.f32 0.0, %v1084
        %1086 = vdwg.mxu0
        %v1087 = vadd.f32 %v731, %v992
        %v1088 = vadd.f32 %v734, %v995
        %v1089 = vadd.f32 %v737, %v998
        %v1090 = vadd.f32 %v740, %v1001
        %v1091 = vadd.f32 %v743, %v1004
        %v1092 = vadd.f32 %v746, %v1007
        %v1093 = vadd.f32 %v749, %v1010
        %v1094 = vadd.f32 %v752, %v1013
        %v1095 = vadd.f32 %v755, %v1016
        %v1096 = vadd.f32 %v758, %v1019
        %v1097 = vadd.f32 %v761, %v1022
        %v1098 = vadd.f32 %v764, %v1025
        %v1099 = vadd.f32 %v767, %v1028
        %v1100 = vadd.f32 %v770, %v1031
        %v1101 = vadd.f32 %v773, %v1034
        %v1102 = vadd.f32 %v776, %v1037
        %v1103 = vadd.f32 %v779, %v1040
        %v1104 = vadd.f32 %v782, %v1043
        %v1105 = vadd.f32 %v785, %v1046
        %v1106 = vadd.f32 %v788, %v1049
        %v1107 = vadd.f32 %v791, %v1052
        %v1108 = vadd.f32 %v794, %v1055
        %v1109 = vadd.f32 %v797, %v1058
        %v1110 = vadd.f32 %v800, %v1061
        %v1111 = vadd.f32 %v803, %v1064
        %v1112 = vadd.f32 %v806, %v1067
        %v1113 = vadd.f32 %v809, %v1070
        %v1114 = vadd.f32 %v812, %v1073
        %v1115 = vadd.f32 %v815, %v1076
        %v1116 = vadd.f32 %v818, %v1079
        %v1117 = vadd.f32 %v821, %v1082
        %v1118 = vadd.f32 %v824, %v1085
        %s1119 = scalar_lea.vmem %s2, 48
        %v1120 = vld [vmem:[%s1119] sm:$0xff]
        %v1121 = vld [vmem:[%s1119 + $0x8] sm:$0xff]
        %v1123 = vsel %vm471, %v331, 0
        %v1126 = vsel %vm471, %v332, 0
        %1128 = vmatpush.msra.mxu0 0.0
        %1129 = vmatpush.msra.mxu0 0.0
        %1130 = vmatpush.msra.mxu0 0.0
        %1131 = vmatpush.msra.mxu0 0.0
        %1132 = vmatpush.msra.mxu0 0.0
        %1133 = vmatpush.msra.mxu0 0.0
        %1134 = vmatpush.msra.mxu0 0.0
        %1135 = vmatpush.msra.mxu0 0.0
        %1136 = vmatpush.msra.mxu0 0.0
        %1137 = vmatpush.msra.mxu0 0.0
        %1138 = vmatpush.msra.mxu0 0.0
        %1139 = vmatpush.msra.mxu0 0.0
        %1140 = vmatpush.msra.mxu0 0.0
        %1141 = vmatpush.msra.mxu0 0.0
        %1142 = vmatpush.msra.mxu0 %v1121
        %1143 = vmatpush.msra.mxu0 %v1120
        %1144 = vmatmul.f32.gmra.mxu0 %v653
        %v1145 = vpop.f32.mrf.mxu0
        %v1146 = vadd.f32 0.0, %v1145
        %1147 = vmatmul.f32.gmra.mxu0 %v655
        %v1148 = vpop.f32.mrf.mxu0
        %v1149 = vadd.f32 0.0, %v1148
        %1150 = vmatmul.f32.gmra.mxu0 %v657
        %v1151 = vpop.f32.mrf.mxu0
        %v1152 = vadd.f32 0.0, %v1151
        %1153 = vmatmul.f32.gmra.mxu0 %v659
        %v1154 = vpop.f32.mrf.mxu0
        %v1155 = vadd.f32 0.0, %v1154
        %1156 = vmatmul.f32.gmra.mxu0 %v661
        %v1157 = vpop.f32.mrf.mxu0
        %v1158 = vadd.f32 0.0, %v1157
        %1159 = vmatmul.f32.gmra.mxu0 %v663
        %v1160 = vpop.f32.mrf.mxu0
        %v1161 = vadd.f32 0.0, %v1160
        %1162 = vmatmul.f32.gmra.mxu0 %v665
        %v1163 = vpop.f32.mrf.mxu0
        %v1164 = vadd.f32 0.0, %v1163
        %1165 = vmatmul.f32.gmra.mxu0 %v667
        %v1166 = vpop.f32.mrf.mxu0
        %v1167 = vadd.f32 0.0, %v1166
        %1168 = vmatmul.f32.gmra.mxu0 %v669
        %v1169 = vpop.f32.mrf.mxu0
        %v1170 = vadd.f32 0.0, %v1169
        %1171 = vmatmul.f32.gmra.mxu0 %v671
        %v1172 = vpop.f32.mrf.mxu0
        %v1173 = vadd.f32 0.0, %v1172
        %1174 = vmatmul.f32.gmra.mxu0 %v673
        %v1175 = vpop.f32.mrf.mxu0
        %v1176 = vadd.f32 0.0, %v1175
        %1177 = vmatmul.f32.gmra.mxu0 %v675
        %v1178 = vpop.f32.mrf.mxu0
        %v1179 = vadd.f32 0.0, %v1178
        %1180 = vmatmul.f32.gmra.mxu0 %v677
        %v1181 = vpop.f32.mrf.mxu0
        %v1182 = vadd.f32 0.0, %v1181
        %1183 = vmatmul.f32.gmra.mxu0 %v679
        %v1184 = vpop.f32.mrf.mxu0
        %v1185 = vadd.f32 0.0, %v1184
        %1186 = vmatmul.f32.gmra.mxu0 %v681
        %v1187 = vpop.f32.mrf.mxu0
        %v1188 = vadd.f32 0.0, %v1187
        %1189 = vmatmul.f32.gmra.mxu0 %v683
        %v1190 = vpop.f32.mrf.mxu0
        %v1191 = vadd.f32 0.0, %v1190
        %1192 = vmatmul.f32.gmra.mxu0 %v685
        %v1193 = vpop.f32.mrf.mxu0
        %v1194 = vadd.f32 0.0, %v1193
        %1195 = vmatmul.f32.gmra.mxu0 %v687
        %v1196 = vpop.f32.mrf.mxu0
        %v1197 = vadd.f32 0.0, %v1196
        %1198 = vmatmul.f32.gmra.mxu0 %v689
        %v1199 = vpop.f32.mrf.mxu0
        %v1200 = vadd.f32 0.0, %v1199
        %1201 = vmatmul.f32.gmra.mxu0 %v691
        %v1202 = vpop.f32.mrf.mxu0
        %v1203 = vadd.f32 0.0, %v1202
        %1204 = vmatmul.f32.gmra.mxu0 %v693
        %v1205 = vpop.f32.mrf.mxu0
        %v1206 = vadd.f32 0.0, %v1205
        %1207 = vmatmul.f32.gmra.mxu0 %v695
        %v1208 = vpop.f32.mrf.mxu0
        %v1209 = vadd.f32 0.0, %v1208
        %1210 = vmatmul.f32.gmra.mxu0 %v697
        %v1211 = vpop.f32.mrf.mxu0
        %v1212 = vadd.f32 0.0, %v1211
        %1213 = vmatmul.f32.gmra.mxu0 %v699
        %v1214 = vpop.f32.mrf.mxu0
        %v1215 = vadd.f32 0.0, %v1214
        %1216 = vmatmul.f32.gmra.mxu0 %v701
        %v1217 = vpop.f32.mrf.mxu0
        %v1218 = vadd.f32 0.0, %v1217
        %1219 = vmatmul.f32.gmra.mxu0 %v703
        %v1220 = vpop.f32.mrf.mxu0
        %v1221 = vadd.f32 0.0, %v1220
        %1222 = vmatmul.f32.gmra.mxu0 %v705
        %v1223 = vpop.f32.mrf.mxu0
        %v1224 = vadd.f32 0.0, %v1223
        %1225 = vmatmul.f32.gmra.mxu0 %v707
        %v1226 = vpop.f32.mrf.mxu0
        %v1227 = vadd.f32 0.0, %v1226
        %1228 = vmatmul.f32.gmra.mxu0 %v709
        %v1229 = vpop.f32.mrf.mxu0
        %v1230 = vadd.f32 0.0, %v1229
        %1231 = vmatmul.f32.gmra.mxu0 %v711
        %v1232 = vpop.f32.mrf.mxu0
        %v1233 = vadd.f32 0.0, %v1232
        %1234 = vmatmul.f32.gmra.mxu0 %v1123
        %v1235 = vpop.f32.mrf.mxu0
        %v1236 = vadd.f32 0.0, %v1235
        %1237 = vmatmul.f32.gmra.mxu0 %v1126
        %v1238 = vpop.f32.mrf.mxu0
        %v1239 = vadd.f32 0.0, %v1238
        %1240 = vdwg.mxu0
        %v1241 = vadd.f32 %v1087, %v1146
        %v1242 = vadd.f32 %v1088, %v1149
        %v1243 = vadd.f32 %v1089, %v1152
        %v1244 = vadd.f32 %v1090, %v1155
        %v1245 = vadd.f32 %v1091, %v1158
        %v1246 = vadd.f32 %v1092, %v1161
        %v1247 = vadd.f32 %v1093, %v1164
        %v1248 = vadd.f32 %v1094, %v1167
        %v1249 = vadd.f32 %v1095, %v1170
        %v1250 = vadd.f32 %v1096, %v1173
        %v1251 = vadd.f32 %v1097, %v1176
        %v1252 = vadd.f32 %v1098, %v1179
        %v1253 = vadd.f32 %v1099, %v1182
        %v1254 = vadd.f32 %v1100, %v1185
        %v1255 = vadd.f32 %v1101, %v1188
        %v1256 = vadd.f32 %v1102, %v1191
        %v1257 = vadd.f32 %v1103, %v1194
        %v1258 = vadd.f32 %v1104, %v1197
        %v1259 = vadd.f32 %v1105, %v1200
        %v1260 = vadd.f32 %v1106, %v1203
        %v1261 = vadd.f32 %v1107, %v1206
        %v1262 = vadd.f32 %v1108, %v1209
        %v1263 = vadd.f32 %v1109, %v1212
        %v1264 = vadd.f32 %v1110, %v1215
        %v1265 = vadd.f32 %v1111, %v1218
        %v1266 = vadd.f32 %v1112, %v1221
        %v1267 = vadd.f32 %v1113, %v1224
        %v1268 = vadd.f32 %v1114, %v1227
        %v1269 = vadd.f32 %v1115, %v1230
        %v1270 = vadd.f32 %v1116, %v1233
        %v1271 = vadd.f32 %v1117, %v1236
        %v1272 = vadd.f32 %v1118, %v1239
        %v1274 = vrot.slane %v331, 1
        %v1275 = vrot.slane %v332, 1
        %v1276 = vsel %vm387, %v1274, %v1275
        %v1277 = vrot.slane %v333, 1
        %v1278 = vsel %vm387, %v1275, %v1277
        %s1279 = scalar_lea.vmem %s2, 64
        %v1280 = vld [vmem:[%s1279] sm:$0xff]
        %v1281 = vld [vmem:[%s1279 + $0x8] sm:$0xff]
        %v1282 = vsel %vm471, %v1276, 0
        %v1284 = vsel %vm471, %v1278, 0
        %1286 = vmatpush.msra.mxu0 0.0
        %1287 = vmatpush.msra.mxu0 0.0
        %1288 = vmatpush.msra.mxu0 0.0
        %1289 = vmatpush.msra.mxu0 0.0
        %1290 = vmatpush.msra.mxu0 0.0
        %1291 = vmatpush.msra.mxu0 0.0
        %1292 = vmatpush.msra.mxu0 0.0
        %1293 = vmatpush.msra.mxu0 0.0
        %1294 = vmatpush.msra.mxu0 0.0
        %1295 = vmatpush.msra.mxu0 0.0
        %1296 = vmatpush.msra.mxu0 0.0
        %1297 = vmatpush.msra.mxu0 0.0
        %1298 = vmatpush.msra.mxu0 0.0
        %1299 = vmatpush.msra.mxu0 0.0
        %1300 = vmatpush.msra.mxu0 %v1281
        %1301 = vmatpush.msra.mxu0 %v1280
        %1302 = vmatmul.f32.gmra.mxu0 %v476
        %v1303 = vpop.f32.mrf.mxu0
        %v1304 = vadd.f32 0.0, %v1303
        %1305 = vmatmul.f32.gmra.mxu0 %v478
        %v1306 = vpop.f32.mrf.mxu0
        %v1307 = vadd.f32 0.0, %v1306
        %1308 = vmatmul.f32.gmra.mxu0 %v480
        %v1309 = vpop.f32.mrf.mxu0
        %v1310 = vadd.f32 0.0, %v1309
        %1311 = vmatmul.f32.gmra.mxu0 %v482
        %v1312 = vpop.f32.mrf.mxu0
        %v1313 = vadd.f32 0.0, %v1312
        %1314 = vmatmul.f32.gmra.mxu0 %v484
        %v1315 = vpop.f32.mrf.mxu0
        %v1316 = vadd.f32 0.0, %v1315
        %1317 = vmatmul.f32.gmra.mxu0 %v486
        %v1318 = vpop.f32.mrf.mxu0
        %v1319 = vadd.f32 0.0, %v1318
        %1320 = vmatmul.f32.gmra.mxu0 %v488
        %v1321 = vpop.f32.mrf.mxu0
        %v1322 = vadd.f32 0.0, %v1321
        %1323 = vmatmul.f32.gmra.mxu0 %v490
        %v1324 = vpop.f32.mrf.mxu0
        %v1325 = vadd.f32 0.0, %v1324
        %1326 = vmatmul.f32.gmra.mxu0 %v492
        %v1327 = vpop.f32.mrf.mxu0
        %v1328 = vadd.f32 0.0, %v1327
        %1329 = vmatmul.f32.gmra.mxu0 %v494
        %v1330 = vpop.f32.mrf.mxu0
        %v1331 = vadd.f32 0.0, %v1330
        %1332 = vmatmul.f32.gmra.mxu0 %v496
        %v1333 = vpop.f32.mrf.mxu0
        %v1334 = vadd.f32 0.0, %v1333
        %1335 = vmatmul.f32.gmra.mxu0 %v498
        %v1336 = vpop.f32.mrf.mxu0
        %v1337 = vadd.f32 0.0, %v1336
        %1338 = vmatmul.f32.gmra.mxu0 %v500
        %v1339 = vpop.f32.mrf.mxu0
        %v1340 = vadd.f32 0.0, %v1339
        %1341 = vmatmul.f32.gmra.mxu0 %v502
        %v1342 = vpop.f32.mrf.mxu0
        %v1343 = vadd.f32 0.0, %v1342
        %1344 = vmatmul.f32.gmra.mxu0 %v504
        %v1345 = vpop.f32.mrf.mxu0
        %v1346 = vadd.f32 0.0, %v1345
        %1347 = vmatmul.f32.gmra.mxu0 %v506
        %v1348 = vpop.f32.mrf.mxu0
        %v1349 = vadd.f32 0.0, %v1348
        %1350 = vmatmul.f32.gmra.mxu0 %v508
        %v1351 = vpop.f32.mrf.mxu0
        %v1352 = vadd.f32 0.0, %v1351
        %1353 = vmatmul.f32.gmra.mxu0 %v510
        %v1354 = vpop.f32.mrf.mxu0
        %v1355 = vadd.f32 0.0, %v1354
        %1356 = vmatmul.f32.gmra.mxu0 %v512
        %v1357 = vpop.f32.mrf.mxu0
        %v1358 = vadd.f32 0.0, %v1357
        %1359 = vmatmul.f32.gmra.mxu0 %v514
        %v1360 = vpop.f32.mrf.mxu0
        %v1361 = vadd.f32 0.0, %v1360
        %1362 = vmatmul.f32.gmra.mxu0 %v516
        %v1363 = vpop.f32.mrf.mxu0
        %v1364 = vadd.f32 0.0, %v1363
        %1365 = vmatmul.f32.gmra.mxu0 %v518
        %v1366 = vpop.f32.mrf.mxu0
        %v1367 = vadd.f32 0.0, %v1366
        %1368 = vmatmul.f32.gmra.mxu0 %v520
        %v1369 = vpop.f32.mrf.mxu0
        %v1370 = vadd.f32 0.0, %v1369
        %1371 = vmatmul.f32.gmra.mxu0 %v522
        %v1372 = vpop.f32.mrf.mxu0
        %v1373 = vadd.f32 0.0, %v1372
        %1374 = vmatmul.f32.gmra.mxu0 %v524
        %v1375 = vpop.f32.mrf.mxu0
        %v1376 = vadd.f32 0.0, %v1375
        %1377 = vmatmul.f32.gmra.mxu0 %v526
        %v1378 = vpop.f32.mrf.mxu0
        %v1379 = vadd.f32 0.0, %v1378
        %1380 = vmatmul.f32.gmra.mxu0 %v528
        %v1381 = vpop.f32.mrf.mxu0
        %v1382 = vadd.f32 0.0, %v1381
        %1383 = vmatmul.f32.gmra.mxu0 %v530
        %v1384 = vpop.f32.mrf.mxu0
        %v1385 = vadd.f32 0.0, %v1384
        %1386 = vmatmul.f32.gmra.mxu0 %v532
        %v1387 = vpop.f32.mrf.mxu0
        %v1388 = vadd.f32 0.0, %v1387
        %1389 = vmatmul.f32.gmra.mxu0 %v534
        %v1390 = vpop.f32.mrf.mxu0
        %v1391 = vadd.f32 0.0, %v1390
        %1392 = vmatmul.f32.gmra.mxu0 %v1282
        %v1393 = vpop.f32.mrf.mxu0
        %v1394 = vadd.f32 0.0, %v1393
        %1395 = vmatmul.f32.gmra.mxu0 %v1284
        %v1396 = vpop.f32.mrf.mxu0
        %v1397 = vadd.f32 0.0, %v1396
        %1398 = vdwg.mxu0
        %v1399 = vadd.f32 %v1241, %v1304
        %v1400 = vadd.f32 %v1242, %v1307
        %v1401 = vadd.f32 %v1243, %v1310
        %v1402 = vadd.f32 %v1244, %v1313
        %v1403 = vadd.f32 %v1245, %v1316
        %v1404 = vadd.f32 %v1246, %v1319
        %v1405 = vadd.f32 %v1247, %v1322
        %v1406 = vadd.f32 %v1248, %v1325
        %v1407 = vadd.f32 %v1249, %v1328
        %v1408 = vadd.f32 %v1250, %v1331
        %v1409 = vadd.f32 %v1251, %v1334
        %v1410 = vadd.f32 %v1252, %v1337
        %v1411 = vadd.f32 %v1253, %v1340
        %v1412 = vadd.f32 %v1254, %v1343
        %v1413 = vadd.f32 %v1255, %v1346
        %v1414 = vadd.f32 %v1256, %v1349
        %v1415 = vadd.f32 %v1257, %v1352
        %v1416 = vadd.f32 %v1258, %v1355
        %v1417 = vadd.f32 %v1259, %v1358
        %v1418 = vadd.f32 %v1260, %v1361
        %v1419 = vadd.f32 %v1261, %v1364
        %v1420 = vadd.f32 %v1262, %v1367
        %v1421 = vadd.f32 %v1263, %v1370
        %v1422 = vadd.f32 %v1264, %v1373
        %v1423 = vadd.f32 %v1265, %v1376
        %v1424 = vadd.f32 %v1266, %v1379
        %v1425 = vadd.f32 %v1267, %v1382
        %v1426 = vadd.f32 %v1268, %v1385
        %v1427 = vadd.f32 %v1269, %v1388
        %v1428 = vadd.f32 %v1270, %v1391
        %v1429 = vadd.f32 %v1271, %v1394
        %v1430 = vadd.f32 %v1272, %v1397
        %v1431 = vrot.slane %v331, 2
        %v1432 = vrot.slane %v332, 2
        %v1433 = vsel %vm826, %v1431, %v1432
        %v1434 = vrot.slane %v333, 2
        %v1435 = vsel %vm826, %v1432, %v1434
        %s1436 = scalar_lea.vmem %s2, 80
        %v1437 = vld [vmem:[%s1436] sm:$0xff]
        %v1438 = vld [vmem:[%s1436 + $0x8] sm:$0xff]
        %v1439 = vsel %vm471, %v1433, 0
        %v1441 = vsel %vm471, %v1435, 0
        %1443 = vmatpush.msra.mxu0 0.0
        %1444 = vmatpush.msra.mxu0 0.0
        %1445 = vmatpush.msra.mxu0 0.0
        %1446 = vmatpush.msra.mxu0 0.0
        %1447 = vmatpush.msra.mxu0 0.0
        %1448 = vmatpush.msra.mxu0 0.0
        %1449 = vmatpush.msra.mxu0 0.0
        %1450 = vmatpush.msra.mxu0 0.0
        %1451 = vmatpush.msra.mxu0 0.0
        %1452 = vmatpush.msra.mxu0 0.0
        %1453 = vmatpush.msra.mxu0 0.0
        %1454 = vmatpush.msra.mxu0 0.0
        %1455 = vmatpush.msra.mxu0 0.0
        %1456 = vmatpush.msra.mxu0 0.0
        %1457 = vmatpush.msra.mxu0 %v1438
        %1458 = vmatpush.msra.mxu0 %v1437
        %1459 = vmatmul.f32.gmra.mxu0 %v914
        %v1460 = vpop.f32.mrf.mxu0
        %v1461 = vadd.f32 0.0, %v1460
        %1462 = vmatmul.f32.gmra.mxu0 %v916
        %v1463 = vpop.f32.mrf.mxu0
        %v1464 = vadd.f32 0.0, %v1463
        %1465 = vmatmul.f32.gmra.mxu0 %v918
        %v1466 = vpop.f32.mrf.mxu0
        %v1467 = vadd.f32 0.0, %v1466
        %1468 = vmatmul.f32.gmra.mxu0 %v920
        %v1469 = vpop.f32.mrf.mxu0
        %v1470 = vadd.f32 0.0, %v1469
        %1471 = vmatmul.f32.gmra.mxu0 %v922
        %v1472 = vpop.f32.mrf.mxu0
        %v1473 = vadd.f32 0.0, %v1472
        %1474 = vmatmul.f32.gmra.mxu0 %v924
        %v1475 = vpop.f32.mrf.mxu0
        %v1476 = vadd.f32 0.0, %v1475
        %1477 = vmatmul.f32.gmra.mxu0 %v926
        %v1478 = vpop.f32.mrf.mxu0
        %v1479 = vadd.f32 0.0, %v1478
        %1480 = vmatmul.f32.gmra.mxu0 %v928
        %v1481 = vpop.f32.mrf.mxu0
        %v1482 = vadd.f32 0.0, %v1481
        %1483 = vmatmul.f32.gmra.mxu0 %v930
        %v1484 = vpop.f32.mrf.mxu0
        %v1485 = vadd.f32 0.0, %v1484
        %1486 = vmatmul.f32.gmra.mxu0 %v932
        %v1487 = vpop.f32.mrf.mxu0
        %v1488 = vadd.f32 0.0, %v1487
        %1489 = vmatmul.f32.gmra.mxu0 %v934
        %v1490 = vpop.f32.mrf.mxu0
        %v1491 = vadd.f32 0.0, %v1490
        %1492 = vmatmul.f32.gmra.mxu0 %v936
        %v1493 = vpop.f32.mrf.mxu0
        %v1494 = vadd.f32 0.0, %v1493
        %1495 = vmatmul.f32.gmra.mxu0 %v938
        %v1496 = vpop.f32.mrf.mxu0
        %v1497 = vadd.f32 0.0, %v1496
        %1498 = vmatmul.f32.gmra.mxu0 %v940
        %v1499 = vpop.f32.mrf.mxu0
        %v1500 = vadd.f32 0.0, %v1499
        %1501 = vmatmul.f32.gmra.mxu0 %v942
        %v1502 = vpop.f32.mrf.mxu0
        %v1503 = vadd.f32 0.0, %v1502
        %1504 = vmatmul.f32.gmra.mxu0 %v944
        %v1505 = vpop.f32.mrf.mxu0
        %v1506 = vadd.f32 0.0, %v1505
        %1507 = vmatmul.f32.gmra.mxu0 %v946
        %v1508 = vpop.f32.mrf.mxu0
        %v1509 = vadd.f32 0.0, %v1508
        %1510 = vmatmul.f32.gmra.mxu0 %v948
        %v1511 = vpop.f32.mrf.mxu0
        %v1512 = vadd.f32 0.0, %v1511
        %1513 = vmatmul.f32.gmra.mxu0 %v950
        %v1514 = vpop.f32.mrf.mxu0
        %v1515 = vadd.f32 0.0, %v1514
        %1516 = vmatmul.f32.gmra.mxu0 %v952
        %v1517 = vpop.f32.mrf.mxu0
        %v1518 = vadd.f32 0.0, %v1517
        %1519 = vmatmul.f32.gmra.mxu0 %v954
        %v1520 = vpop.f32.mrf.mxu0
        %v1521 = vadd.f32 0.0, %v1520
        %1522 = vmatmul.f32.gmra.mxu0 %v956
        %v1523 = vpop.f32.mrf.mxu0
        %v1524 = vadd.f32 0.0, %v1523
        %1525 = vmatmul.f32.gmra.mxu0 %v958
        %v1526 = vpop.f32.mrf.mxu0
        %v1527 = vadd.f32 0.0, %v1526
        %1528 = vmatmul.f32.gmra.mxu0 %v960
        %v1529 = vpop.f32.mrf.mxu0
        %v1530 = vadd.f32 0.0, %v1529
        %1531 = vmatmul.f32.gmra.mxu0 %v962
        %v1532 = vpop.f32.mrf.mxu0
        %v1533 = vadd.f32 0.0, %v1532
        %1534 = vmatmul.f32.gmra.mxu0 %v964
        %v1535 = vpop.f32.mrf.mxu0
        %v1536 = vadd.f32 0.0, %v1535
        %1537 = vmatmul.f32.gmra.mxu0 %v966
        %v1538 = vpop.f32.mrf.mxu0
        %v1539 = vadd.f32 0.0, %v1538
        %1540 = vmatmul.f32.gmra.mxu0 %v968
        %v1541 = vpop.f32.mrf.mxu0
        %v1542 = vadd.f32 0.0, %v1541
        %1543 = vmatmul.f32.gmra.mxu0 %v970
        %v1544 = vpop.f32.mrf.mxu0
        %v1545 = vadd.f32 0.0, %v1544
        %1546 = vmatmul.f32.gmra.mxu0 %v972
        %v1547 = vpop.f32.mrf.mxu0
        %v1548 = vadd.f32 0.0, %v1547
        %1549 = vmatmul.f32.gmra.mxu0 %v1439
        %v1550 = vpop.f32.mrf.mxu0
        %v1551 = vadd.f32 0.0, %v1550
        %1552 = vmatmul.f32.gmra.mxu0 %v1441
        %v1553 = vpop.f32.mrf.mxu0
        %v1554 = vadd.f32 0.0, %v1553
        %1555 = vdwg.mxu0
        %v1556 = vadd.f32 %v1399, %v1461
        %v1557 = vadd.f32 %v1400, %v1464
        %v1558 = vadd.f32 %v1401, %v1467
        %v1559 = vadd.f32 %v1402, %v1470
        %v1560 = vadd.f32 %v1403, %v1473
        %v1561 = vadd.f32 %v1404, %v1476
        %v1562 = vadd.f32 %v1405, %v1479
        %v1563 = vadd.f32 %v1406, %v1482
        %v1564 = vadd.f32 %v1407, %v1485
        %v1565 = vadd.f32 %v1408, %v1488
        %v1566 = vadd.f32 %v1409, %v1491
        %v1567 = vadd.f32 %v1410, %v1494
        %v1568 = vadd.f32 %v1411, %v1497
        %v1569 = vadd.f32 %v1412, %v1500
        %v1570 = vadd.f32 %v1413, %v1503
        %v1571 = vadd.f32 %v1414, %v1506
        %v1572 = vadd.f32 %v1415, %v1509
        %v1573 = vadd.f32 %v1416, %v1512
        %v1574 = vadd.f32 %v1417, %v1515
        %v1575 = vadd.f32 %v1418, %v1518
        %v1576 = vadd.f32 %v1419, %v1521
        %v1577 = vadd.f32 %v1420, %v1524
        %v1578 = vadd.f32 %v1421, %v1527
        %v1579 = vadd.f32 %v1422, %v1530
        %v1580 = vadd.f32 %v1423, %v1533
        %v1581 = vadd.f32 %v1424, %v1536
        %v1582 = vadd.f32 %v1425, %v1539
        %v1583 = vadd.f32 %v1426, %v1542
        %v1584 = vadd.f32 %v1427, %v1545
        %v1585 = vadd.f32 %v1428, %v1548
        %v1586 = vadd.f32 %v1429, %v1551
        %v1587 = vadd.f32 %v1430, %v1554
        %s1588 = scalar_lea.vmem %s2, 96
        %v1589 = vld [vmem:[%s1588] sm:$0xff]
        %v1590 = vld [vmem:[%s1588 + $0x8] sm:$0xff]
        %v1592 = vsel %vm471, %v334, 0
        %v1595 = vsel %vm471, %v335, 0
        %1597 = vmatpush.msra.mxu0 0.0
        %1598 = vmatpush.msra.mxu0 0.0
        %1599 = vmatpush.msra.mxu0 0.0
        %1600 = vmatpush.msra.mxu0 0.0
        %1601 = vmatpush.msra.mxu0 0.0
        %1602 = vmatpush.msra.mxu0 0.0
        %1603 = vmatpush.msra.mxu0 0.0
        %1604 = vmatpush.msra.mxu0 0.0
        %1605 = vmatpush.msra.mxu0 0.0
        %1606 = vmatpush.msra.mxu0 0.0
        %1607 = vmatpush.msra.mxu0 0.0
        %1608 = vmatpush.msra.mxu0 0.0
        %1609 = vmatpush.msra.mxu0 0.0
        %1610 = vmatpush.msra.mxu0 0.0
        %1611 = vmatpush.msra.mxu0 %v1590
        %1612 = vmatpush.msra.mxu0 %v1589
        %1613 = vmatmul.f32.gmra.mxu0 %v657
        %v1614 = vpop.f32.mrf.mxu0
        %v1615 = vadd.f32 0.0, %v1614
        %1616 = vmatmul.f32.gmra.mxu0 %v659
        %v1617 = vpop.f32.mrf.mxu0
        %v1618 = vadd.f32 0.0, %v1617
        %1619 = vmatmul.f32.gmra.mxu0 %v661
        %v1620 = vpop.f32.mrf.mxu0
        %v1621 = vadd.f32 0.0, %v1620
        %1622 = vmatmul.f32.gmra.mxu0 %v663
        %v1623 = vpop.f32.mrf.mxu0
        %v1624 = vadd.f32 0.0, %v1623
        %1625 = vmatmul.f32.gmra.mxu0 %v665
        %v1626 = vpop.f32.mrf.mxu0
        %v1627 = vadd.f32 0.0, %v1626
        %1628 = vmatmul.f32.gmra.mxu0 %v667
        %v1629 = vpop.f32.mrf.mxu0
        %v1630 = vadd.f32 0.0, %v1629
        %1631 = vmatmul.f32.gmra.mxu0 %v669
        %v1632 = vpop.f32.mrf.mxu0
        %v1633 = vadd.f32 0.0, %v1632
        %1634 = vmatmul.f32.gmra.mxu0 %v671
        %v1635 = vpop.f32.mrf.mxu0
        %v1636 = vadd.f32 0.0, %v1635
        %1637 = vmatmul.f32.gmra.mxu0 %v673
        %v1638 = vpop.f32.mrf.mxu0
        %v1639 = vadd.f32 0.0, %v1638
        %1640 = vmatmul.f32.gmra.mxu0 %v675
        %v1641 = vpop.f32.mrf.mxu0
        %v1642 = vadd.f32 0.0, %v1641
        %1643 = vmatmul.f32.gmra.mxu0 %v677
        %v1644 = vpop.f32.mrf.mxu0
        %v1645 = vadd.f32 0.0, %v1644
        %1646 = vmatmul.f32.gmra.mxu0 %v679
        %v1647 = vpop.f32.mrf.mxu0
        %v1648 = vadd.f32 0.0, %v1647
        %1649 = vmatmul.f32.gmra.mxu0 %v681
        %v1650 = vpop.f32.mrf.mxu0
        %v1651 = vadd.f32 0.0, %v1650
        %1652 = vmatmul.f32.gmra.mxu0 %v683
        %v1653 = vpop.f32.mrf.mxu0
        %v1654 = vadd.f32 0.0, %v1653
        %1655 = vmatmul.f32.gmra.mxu0 %v685
        %v1656 = vpop.f32.mrf.mxu0
        %v1657 = vadd.f32 0.0, %v1656
        %1658 = vmatmul.f32.gmra.mxu0 %v687
        %v1659 = vpop.f32.mrf.mxu0
        %v1660 = vadd.f32 0.0, %v1659
        %1661 = vmatmul.f32.gmra.mxu0 %v689
        %v1662 = vpop.f32.mrf.mxu0
        %v1663 = vadd.f32 0.0, %v1662
        %1664 = vmatmul.f32.gmra.mxu0 %v691
        %v1665 = vpop.f32.mrf.mxu0
        %v1666 = vadd.f32 0.0, %v1665
        %1667 = vmatmul.f32.gmra.mxu0 %v693
        %v1668 = vpop.f32.mrf.mxu0
        %v1669 = vadd.f32 0.0, %v1668
        %1670 = vmatmul.f32.gmra.mxu0 %v695
        %v1671 = vpop.f32.mrf.mxu0
        %v1672 = vadd.f32 0.0, %v1671
        %1673 = vmatmul.f32.gmra.mxu0 %v697
        %v1674 = vpop.f32.mrf.mxu0
        %v1675 = vadd.f32 0.0, %v1674
        %1676 = vmatmul.f32.gmra.mxu0 %v699
        %v1677 = vpop.f32.mrf.mxu0
        %v1678 = vadd.f32 0.0, %v1677
        %1679 = vmatmul.f32.gmra.mxu0 %v701
        %v1680 = vpop.f32.mrf.mxu0
        %v1681 = vadd.f32 0.0, %v1680
        %1682 = vmatmul.f32.gmra.mxu0 %v703
        %v1683 = vpop.f32.mrf.mxu0
        %v1684 = vadd.f32 0.0, %v1683
        %1685 = vmatmul.f32.gmra.mxu0 %v705
        %v1686 = vpop.f32.mrf.mxu0
        %v1687 = vadd.f32 0.0, %v1686
        %1688 = vmatmul.f32.gmra.mxu0 %v707
        %v1689 = vpop.f32.mrf.mxu0
        %v1690 = vadd.f32 0.0, %v1689
        %1691 = vmatmul.f32.gmra.mxu0 %v709
        %v1692 = vpop.f32.mrf.mxu0
        %v1693 = vadd.f32 0.0, %v1692
        %1694 = vmatmul.f32.gmra.mxu0 %v711
        %v1695 = vpop.f32.mrf.mxu0
        %v1696 = vadd.f32 0.0, %v1695
        %1697 = vmatmul.f32.gmra.mxu0 %v1123
        %v1698 = vpop.f32.mrf.mxu0
        %v1699 = vadd.f32 0.0, %v1698
        %1700 = vmatmul.f32.gmra.mxu0 %v1126
        %v1701 = vpop.f32.mrf.mxu0
        %v1702 = vadd.f32 0.0, %v1701
        %1703 = vmatmul.f32.gmra.mxu0 %v1592
        %v1704 = vpop.f32.mrf.mxu0
        %v1705 = vadd.f32 0.0, %v1704
        %1706 = vmatmul.f32.gmra.mxu0 %v1595
        %v1707 = vpop.f32.mrf.mxu0
        %v1708 = vadd.f32 0.0, %v1707
        %1709 = vdwg.mxu0
        %v1710 = vadd.f32 %v1556, %v1615
        %v1711 = vadd.f32 %v1557, %v1618
        %v1712 = vadd.f32 %v1558, %v1621
        %v1713 = vadd.f32 %v1559, %v1624
        %v1714 = vadd.f32 %v1560, %v1627
        %v1715 = vadd.f32 %v1561, %v1630
        %v1716 = vadd.f32 %v1562, %v1633
        %v1717 = vadd.f32 %v1563, %v1636
        %v1718 = vadd.f32 %v1564, %v1639
        %v1719 = vadd.f32 %v1565, %v1642
        %v1720 = vadd.f32 %v1566, %v1645
        %v1721 = vadd.f32 %v1567, %v1648
        %v1722 = vadd.f32 %v1568, %v1651
        %v1723 = vadd.f32 %v1569, %v1654
        %v1724 = vadd.f32 %v1570, %v1657
        %v1725 = vadd.f32 %v1571, %v1660
        %v1726 = vadd.f32 %v1572, %v1663
        %v1727 = vadd.f32 %v1573, %v1666
        %v1728 = vadd.f32 %v1574, %v1669
        %v1729 = vadd.f32 %v1575, %v1672
        %v1730 = vadd.f32 %v1576, %v1675
        %v1731 = vadd.f32 %v1577, %v1678
        %v1732 = vadd.f32 %v1578, %v1681
        %v1733 = vadd.f32 %v1579, %v1684
        %v1734 = vadd.f32 %v1580, %v1687
        %v1735 = vadd.f32 %v1581, %v1690
        %v1736 = vadd.f32 %v1582, %v1693
        %v1737 = vadd.f32 %v1583, %v1696
        %v1738 = vadd.f32 %v1584, %v1699
        %v1739 = vadd.f32 %v1585, %v1702
        %v1740 = vadd.f32 %v1586, %v1705
        %v1741 = vadd.f32 %v1587, %v1708
        %v1743 = vrot.slane %v334, 1
        %v1744 = vrot.slane %v335, 1
        %v1745 = vsel %vm387, %v1743, %v1744
        %v1746 = vrot.slane %v336, 1
        %v1747 = vsel %vm387, %v1744, %v1746
        %s1748 = scalar_lea.vmem %s2, 112
        %v1749 = vld [vmem:[%s1748] sm:$0xff]
        %v1750 = vld [vmem:[%s1748 + $0x8] sm:$0xff]
        %v1751 = vsel %vm471, %v1745, 0
        %v1753 = vsel %vm471, %v1747, 0
        %1755 = vmatpush.msra.mxu0 0.0
        %1756 = vmatpush.msra.mxu0 0.0
        %1757 = vmatpush.msra.mxu0 0.0
        %1758 = vmatpush.msra.mxu0 0.0
        %1759 = vmatpush.msra.mxu0 0.0
        %1760 = vmatpush.msra.mxu0 0.0
        %1761 = vmatpush.msra.mxu0 0.0
        %1762 = vmatpush.msra.mxu0 0.0
        %1763 = vmatpush.msra.mxu0 0.0
        %1764 = vmatpush.msra.mxu0 0.0
        %1765 = vmatpush.msra.mxu0 0.0
        %1766 = vmatpush.msra.mxu0 0.0
        %1767 = vmatpush.msra.mxu0 0.0
        %1768 = vmatpush.msra.mxu0 0.0
        %1769 = vmatpush.msra.mxu0 %v1750
        %1770 = vmatpush.msra.mxu0 %v1749
        %1771 = vmatmul.f32.gmra.mxu0 %v480
        %v1772 = vpop.f32.mrf.mxu0
        %v1773 = vadd.f32 0.0, %v1772
        %1774 = vmatmul.f32.gmra.mxu0 %v482
        %v1775 = vpop.f32.mrf.mxu0
        %v1776 = vadd.f32 0.0, %v1775
        %1777 = vmatmul.f32.gmra.mxu0 %v484
        %v1778 = vpop.f32.mrf.mxu0
        %v1779 = vadd.f32 0.0, %v1778
        %1780 = vmatmul.f32.gmra.mxu0 %v486
        %v1781 = vpop.f32.mrf.mxu0
        %v1782 = vadd.f32 0.0, %v1781
        %1783 = vmatmul.f32.gmra.mxu0 %v488
        %v1784 = vpop.f32.mrf.mxu0
        %v1785 = vadd.f32 0.0, %v1784
        %1786 = vmatmul.f32.gmra.mxu0 %v490
        %v1787 = vpop.f32.mrf.mxu0
        %v1788 = vadd.f32 0.0, %v1787
        %1789 = vmatmul.f32.gmra.mxu0 %v492
        %v1790 = vpop.f32.mrf.mxu0
        %v1791 = vadd.f32 0.0, %v1790
        %1792 = vmatmul.f32.gmra.mxu0 %v494
        %v1793 = vpop.f32.mrf.mxu0
        %v1794 = vadd.f32 0.0, %v1793
        %1795 = vmatmul.f32.gmra.mxu0 %v496
        %v1796 = vpop.f32.mrf.mxu0
        %v1797 = vadd.f32 0.0, %v1796
        %1798 = vmatmul.f32.gmra.mxu0 %v498
        %v1799 = vpop.f32.mrf.mxu0
        %v1800 = vadd.f32 0.0, %v1799
        %1801 = vmatmul.f32.gmra.mxu0 %v500
        %v1802 = vpop.f32.mrf.mxu0
        %v1803 = vadd.f32 0.0, %v1802
        %1804 = vmatmul.f32.gmra.mxu0 %v502
        %v1805 = vpop.f32.mrf.mxu0
        %v1806 = vadd.f32 0.0, %v1805
        %1807 = vmatmul.f32.gmra.mxu0 %v504
        %v1808 = vpop.f32.mrf.mxu0
        %v1809 = vadd.f32 0.0, %v1808
        %1810 = vmatmul.f32.gmra.mxu0 %v506
        %v1811 = vpop.f32.mrf.mxu0
        %v1812 = vadd.f32 0.0, %v1811
        %1813 = vmatmul.f32.gmra.mxu0 %v508
        %v1814 = vpop.f32.mrf.mxu0
        %v1815 = vadd.f32 0.0, %v1814
        %1816 = vmatmul.f32.gmra.mxu0 %v510
        %v1817 = vpop.f32.mrf.mxu0
        %v1818 = vadd.f32 0.0, %v1817
        %1819 = vmatmul.f32.gmra.mxu0 %v512
        %v1820 = vpop.f32.mrf.mxu0
        %v1821 = vadd.f32 0.0, %v1820
        %1822 = vmatmul.f32.gmra.mxu0 %v514
        %v1823 = vpop.f32.mrf.mxu0
        %v1824 = vadd.f32 0.0, %v1823
        %1825 = vmatmul.f32.gmra.mxu0 %v516
        %v1826 = vpop.f32.mrf.mxu0
        %v1827 = vadd.f32 0.0, %v1826
        %1828 = vmatmul.f32.gmra.mxu0 %v518
        %v1829 = vpop.f32.mrf.mxu0
        %v1830 = vadd.f32 0.0, %v1829
        %1831 = vmatmul.f32.gmra.mxu0 %v520
        %v1832 = vpop.f32.mrf.mxu0
        %v1833 = vadd.f32 0.0, %v1832
        %1834 = vmatmul.f32.gmra.mxu0 %v522
        %v1835 = vpop.f32.mrf.mxu0
        %v1836 = vadd.f32 0.0, %v1835
        %1837 = vmatmul.f32.gmra.mxu0 %v524
        %v1838 = vpop.f32.mrf.mxu0
        %v1839 = vadd.f32 0.0, %v1838
        %1840 = vmatmul.f32.gmra.mxu0 %v526
        %v1841 = vpop.f32.mrf.mxu0
        %v1842 = vadd.f32 0.0, %v1841
        %1843 = vmatmul.f32.gmra.mxu0 %v528
        %v1844 = vpop.f32.mrf.mxu0
        %v1845 = vadd.f32 0.0, %v1844
        %1846 = vmatmul.f32.gmra.mxu0 %v530
        %v1847 = vpop.f32.mrf.mxu0
        %v1848 = vadd.f32 0.0, %v1847
        %1849 = vmatmul.f32.gmra.mxu0 %v532
        %v1850 = vpop.f32.mrf.mxu0
        %v1851 = vadd.f32 0.0, %v1850
        %1852 = vmatmul.f32.gmra.mxu0 %v534
        %v1853 = vpop.f32.mrf.mxu0
        %v1854 = vadd.f32 0.0, %v1853
        %1855 = vmatmul.f32.gmra.mxu0 %v1282
        %v1856 = vpop.f32.mrf.mxu0
        %v1857 = vadd.f32 0.0, %v1856
        %1858 = vmatmul.f32.gmra.mxu0 %v1284
        %v1859 = vpop.f32.mrf.mxu0
        %v1860 = vadd.f32 0.0, %v1859
        %1861 = vmatmul.f32.gmra.mxu0 %v1751
        %v1862 = vpop.f32.mrf.mxu0
        %v1863 = vadd.f32 0.0, %v1862
        %1864 = vmatmul.f32.gmra.mxu0 %v1753
        %v1865 = vpop.f32.mrf.mxu0
        %v1866 = vadd.f32 0.0, %v1865
        %1867 = vdwg.mxu0
        %v1868 = vadd.f32 %v1710, %v1773
        %v1869 = vadd.f32 %v1711, %v1776
        %v1870 = vadd.f32 %v1712, %v1779
        %v1871 = vadd.f32 %v1713, %v1782
        %v1872 = vadd.f32 %v1714, %v1785
        %v1873 = vadd.f32 %v1715, %v1788
        %v1874 = vadd.f32 %v1716, %v1791
        %v1875 = vadd.f32 %v1717, %v1794
        %v1876 = vadd.f32 %v1718, %v1797
        %v1877 = vadd.f32 %v1719, %v1800
        %v1878 = vadd.f32 %v1720, %v1803
        %v1879 = vadd.f32 %v1721, %v1806
        %v1880 = vadd.f32 %v1722, %v1809
        %v1881 = vadd.f32 %v1723, %v1812
        %v1882 = vadd.f32 %v1724, %v1815
        %v1883 = vadd.f32 %v1725, %v1818
        %v1884 = vadd.f32 %v1726, %v1821
        %v1885 = vadd.f32 %v1727, %v1824
        %v1886 = vadd.f32 %v1728, %v1827
        %v1887 = vadd.f32 %v1729, %v1830
        %v1888 = vadd.f32 %v1730, %v1833
        %v1889 = vadd.f32 %v1731, %v1836
        %v1890 = vadd.f32 %v1732, %v1839
        %v1891 = vadd.f32 %v1733, %v1842
        %v1892 = vadd.f32 %v1734, %v1845
        %v1893 = vadd.f32 %v1735, %v1848
        %v1894 = vadd.f32 %v1736, %v1851
        %v1895 = vadd.f32 %v1737, %v1854
        %v1896 = vadd.f32 %v1738, %v1857
        %v1897 = vadd.f32 %v1739, %v1860
        %v1898 = vadd.f32 %v1740, %v1863
        %v1899 = vadd.f32 %v1741, %v1866
        %v1900 = vrot.slane %v334, 2
        %v1901 = vrot.slane %v335, 2
        %v1902 = vsel %vm826, %v1900, %v1901
        %v1903 = vrot.slane %v336, 2
        %v1904 = vsel %vm826, %v1901, %v1903
        %s1905 = scalar_lea.vmem %s2, 128
        %v1906 = vld [vmem:[%s1905] sm:$0xff]
        %v1907 = vld [vmem:[%s1905 + $0x8] sm:$0xff]
        %v1908 = vsel %vm471, %v1902, 0
        %v1910 = vsel %vm471, %v1904, 0
        %1912 = vmatpush.msra.mxu0 0.0
        %1913 = vmatpush.msra.mxu0 0.0
        %1914 = vmatpush.msra.mxu0 0.0
        %1915 = vmatpush.msra.mxu0 0.0
        %1916 = vmatpush.msra.mxu0 0.0
        %1917 = vmatpush.msra.mxu0 0.0
        %1918 = vmatpush.msra.mxu0 0.0
        %1919 = vmatpush.msra.mxu0 0.0
        %1920 = vmatpush.msra.mxu0 0.0
        %1921 = vmatpush.msra.mxu0 0.0
        %1922 = vmatpush.msra.mxu0 0.0
        %1923 = vmatpush.msra.mxu0 0.0
        %1924 = vmatpush.msra.mxu0 0.0
        %1925 = vmatpush.msra.mxu0 0.0
        %1926 = vmatpush.msra.mxu0 %v1907
        %1927 = vmatpush.msra.mxu0 %v1906
        %1928 = vmatmul.f32.gmra.mxu0 %v918
        %v1929 = vpop.f32.mrf.mxu0
        %v1930 = vadd.f32 0.0, %v1929
        %1931 = vmatmul.f32.gmra.mxu0 %v920
        %v1932 = vpop.f32.mrf.mxu0
        %v1933 = vadd.f32 0.0, %v1932
        %1934 = vmatmul.f32.gmra.mxu0 %v922
        %v1935 = vpop.f32.mrf.mxu0
        %v1936 = vadd.f32 0.0, %v1935
        %1937 = vmatmul.f32.gmra.mxu0 %v924
        %v1938 = vpop.f32.mrf.mxu0
        %v1939 = vadd.f32 0.0, %v1938
        %1940 = vmatmul.f32.gmra.mxu0 %v926
        %v1941 = vpop.f32.mrf.mxu0
        %v1942 = vadd.f32 0.0, %v1941
        %1943 = vmatmul.f32.gmra.mxu0 %v928
        %v1944 = vpop.f32.mrf.mxu0
        %v1945 = vadd.f32 0.0, %v1944
        %1946 = vmatmul.f32.gmra.mxu0 %v930
        %v1947 = vpop.f32.mrf.mxu0
        %v1948 = vadd.f32 0.0, %v1947
        %1949 = vmatmul.f32.gmra.mxu0 %v932
        %v1950 = vpop.f32.mrf.mxu0
        %v1951 = vadd.f32 0.0, %v1950
        %1952 = vmatmul.f32.gmra.mxu0 %v934
        %v1953 = vpop.f32.mrf.mxu0
        %v1954 = vadd.f32 0.0, %v1953
        %1955 = vmatmul.f32.gmra.mxu0 %v936
        %v1956 = vpop.f32.mrf.mxu0
        %v1957 = vadd.f32 0.0, %v1956
        %1958 = vmatmul.f32.gmra.mxu0 %v938
        %v1959 = vpop.f32.mrf.mxu0
        %v1960 = vadd.f32 0.0, %v1959
        %1961 = vmatmul.f32.gmra.mxu0 %v940
        %v1962 = vpop.f32.mrf.mxu0
        %v1963 = vadd.f32 0.0, %v1962
        %1964 = vmatmul.f32.gmra.mxu0 %v942
        %v1965 = vpop.f32.mrf.mxu0
        %v1966 = vadd.f32 0.0, %v1965
        %1967 = vmatmul.f32.gmra.mxu0 %v944
        %v1968 = vpop.f32.mrf.mxu0
        %v1969 = vadd.f32 0.0, %v1968
        %1970 = vmatmul.f32.gmra.mxu0 %v946
        %v1971 = vpop.f32.mrf.mxu0
        %v1972 = vadd.f32 0.0, %v1971
        %1973 = vmatmul.f32.gmra.mxu0 %v948
        %v1974 = vpop.f32.mrf.mxu0
        %v1975 = vadd.f32 0.0, %v1974
        %1976 = vmatmul.f32.gmra.mxu0 %v950
        %v1977 = vpop.f32.mrf.mxu0
        %v1978 = vadd.f32 0.0, %v1977
        %1979 = vmatmul.f32.gmra.mxu0 %v952
        %v1980 = vpop.f32.mrf.mxu0
        %v1981 = vadd.f32 0.0, %v1980
        %1982 = vmatmul.f32.gmra.mxu0 %v954
        %v1983 = vpop.f32.mrf.mxu0
        %v1984 = vadd.f32 0.0, %v1983
        %1985 = vmatmul.f32.gmra.mxu0 %v956
        %v1986 = vpop.f32.mrf.mxu0
        %v1987 = vadd.f32 0.0, %v1986
        %1988 = vmatmul.f32.gmra.mxu0 %v958
        %v1989 = vpop.f32.mrf.mxu0
        %v1990 = vadd.f32 0.0, %v1989
        %1991 = vmatmul.f32.gmra.mxu0 %v960
        %v1992 = vpop.f32.mrf.mxu0
        %v1993 = vadd.f32 0.0, %v1992
        %1994 = vmatmul.f32.gmra.mxu0 %v962
        %v1995 = vpop.f32.mrf.mxu0
        %v1996 = vadd.f32 0.0, %v1995
        %1997 = vmatmul.f32.gmra.mxu0 %v964
        %v1998 = vpop.f32.mrf.mxu0
        %v1999 = vadd.f32 0.0, %v1998
        %2000 = vmatmul.f32.gmra.mxu0 %v966
        %v2001 = vpop.f32.mrf.mxu0
        %v2002 = vadd.f32 0.0, %v2001
        %2003 = vmatmul.f32.gmra.mxu0 %v968
        %v2004 = vpop.f32.mrf.mxu0
        %v2005 = vadd.f32 0.0, %v2004
        %2006 = vmatmul.f32.gmra.mxu0 %v970
        %v2007 = vpop.f32.mrf.mxu0
        %v2008 = vadd.f32 0.0, %v2007
        %2009 = vmatmul.f32.gmra.mxu0 %v972
        %v2010 = vpop.f32.mrf.mxu0
        %v2011 = vadd.f32 0.0, %v2010
        %2012 = vmatmul.f32.gmra.mxu0 %v1439
        %v2013 = vpop.f32.mrf.mxu0
        %v2014 = vadd.f32 0.0, %v2013
        %2015 = vmatmul.f32.gmra.mxu0 %v1441
        %v2016 = vpop.f32.mrf.mxu0
        %v2017 = vadd.f32 0.0, %v2016
        %2018 = vmatmul.f32.gmra.mxu0 %v1908
        %v2019 = vpop.f32.mrf.mxu0
        %v2020 = vadd.f32 0.0, %v2019
        %2021 = vmatmul.f32.gmra.mxu0 %v1910
        %v2022 = vpop.f32.mrf.mxu0
        %v2023 = vadd.f32 0.0, %v2022
        %2024 = vdwg.mxu0
        %v2025 = vadd.f32 %v1868, %v1930
        %v2026 = vadd.f32 %v1869, %v1933
        %v2027 = vadd.f32 %v1870, %v1936
        %v2028 = vadd.f32 %v1871, %v1939
        %v2029 = vadd.f32 %v1872, %v1942
        %v2030 = vadd.f32 %v1873, %v1945
        %v2031 = vadd.f32 %v1874, %v1948
        %v2032 = vadd.f32 %v1875, %v1951
        %v2033 = vadd.f32 %v1876, %v1954
        %v2034 = vadd.f32 %v1877, %v1957
        %v2035 = vadd.f32 %v1878, %v1960
        %v2036 = vadd.f32 %v1879, %v1963
        %v2037 = vadd.f32 %v1880, %v1966
        %v2038 = vadd.f32 %v1881, %v1969
        %v2039 = vadd.f32 %v1882, %v1972
        %v2040 = vadd.f32 %v1883, %v1975
        %v2041 = vadd.f32 %v1884, %v1978
        %v2042 = vadd.f32 %v1885, %v1981
        %v2043 = vadd.f32 %v1886, %v1984
        %v2044 = vadd.f32 %v1887, %v1987
        %v2045 = vadd.f32 %v1888, %v1990
        %v2046 = vadd.f32 %v1889, %v1993
        %v2047 = vadd.f32 %v1890, %v1996
        %v2048 = vadd.f32 %v1891, %v1999
        %v2049 = vadd.f32 %v1892, %v2002
        %v2050 = vadd.f32 %v1893, %v2005
        %v2051 = vadd.f32 %v1894, %v2008
        %v2052 = vadd.f32 %v1895, %v2011
        %v2053 = vadd.f32 %v1896, %v2014
        %v2054 = vadd.f32 %v1897, %v2017
        %v2055 = vadd.f32 %v1898, %v2020
        %v2056 = vadd.f32 %v1899, %v2023
        %vm2057 = vcmask 261120
        %2058 = vst.msk [vmem:[%s208] sm:$0xff] %vm2057, %v2025
        %2059 = vst.msk [vmem:[%s208 + $0x8] sm:$0xff] %vm2057, %v2026
        %2060 = vst.msk [vmem:[%s208 + $0x10] sm:$0xff] %vm2057, %v2027
        %2061 = vst.msk [vmem:[%s208 + $0x18] sm:$0xff] %vm2057, %v2028
        %2062 = vst.msk [vmem:[%s208 + $0x20] sm:$0xff] %vm2057, %v2029
        %2063 = vst.msk [vmem:[%s208 + $0x28] sm:$0xff] %vm2057, %v2030
        %2064 = vst.msk [vmem:[%s208 + $0x30] sm:$0xff] %vm2057, %v2031
        %2065 = vst.msk [vmem:[%s208 + $0x38] sm:$0xff] %vm2057, %v2032
        %2066 = vst.msk [vmem:[%s208 + $0x40] sm:$0xff] %vm2057, %v2033
        %2067 = vst.msk [vmem:[%s208 + $0x48] sm:$0xff] %vm2057, %v2034
        %2068 = vst.msk [vmem:[%s208 + $0x50] sm:$0xff] %vm2057, %v2035
        %2069 = vst.msk [vmem:[%s208 + $0x58] sm:$0xff] %vm2057, %v2036
        %2070 = vst.msk [vmem:[%s208 + $0x60] sm:$0xff] %vm2057, %v2037
        %2071 = vst.msk [vmem:[%s208 + $0x68] sm:$0xff] %vm2057, %v2038
        %2072 = vst.msk [vmem:[%s208 + $0x70] sm:$0xff] %vm2057, %v2039
        %2073 = vst.msk [vmem:[%s208 + $0x78] sm:$0xff] %vm2057, %v2040
        %2074 = vst.msk [vmem:[%s208 + $0x80] sm:$0xff] %vm2057, %v2041
        %2075 = vst.msk [vmem:[%s208 + $0x88] sm:$0xff] %vm2057, %v2042
        %2076 = vst.msk [vmem:[%s208 + $0x90] sm:$0xff] %vm2057, %v2043
        %2077 = vst.msk [vmem:[%s208 + $0x98] sm:$0xff] %vm2057, %v2044
        %2078 = vst.msk [vmem:[%s208 + $0xa0] sm:$0xff] %vm2057, %v2045
        %2079 = vst.msk [vmem:[%s208 + $0xa8] sm:$0xff] %vm2057, %v2046
        %2080 = vst.msk [vmem:[%s208 + $0xb0] sm:$0xff] %vm2057, %v2047
        %2081 = vst.msk [vmem:[%s208 + $0xb8] sm:$0xff] %vm2057, %v2048
        %2082 = vst.msk [vmem:[%s208 + $0xc0] sm:$0xff] %vm2057, %v2049
        %2083 = vst.msk [vmem:[%s208 + $0xc8] sm:$0xff] %vm2057, %v2050
        %2084 = vst.msk [vmem:[%s208 + $0xd0] sm:$0xff] %vm2057, %v2051
        %2085 = vst.msk [vmem:[%s208 + $0xd8] sm:$0xff] %vm2057, %v2052
        %2086 = vst.msk [vmem:[%s208 + $0xe0] sm:$0xff] %vm2057, %v2053
        %2087 = vst.msk [vmem:[%s208 + $0xe8] sm:$0xff] %vm2057, %v2054
        %2088 = vst.msk [vmem:[%s208 + $0xf0] sm:$0xff] %vm2057, %v2055
        %2089 = vst.msk [vmem:[%s208 + $0xf8] sm:$0xff] %vm2057, %v2056
        %s2090 = sand.u32 %s116, 1
        %s2091 = scalar_lea.sflag [#allocation3], %s2090
        %s2092 = sand.u32 %s116, 1
        %s2093 = smul.addr %s2092, 256
        %s2094 = scalar_lea.vmem [#allocation2], %s2093
        // Predicated region
        $region33: #{tpu_custom_call.1} parent=31 // pred_check
          %p2095 = pneg %p126
        $region34: #{tpu_custom_call.1} parent=31 // pred_check_branch
          %2097 = sbr.rel (%p2095) target = $region36
        $region35: #{tpu_custom_call.1} parent=31 // pred_region
          %2099 = vsyncadd %s2091, 0
          %s2100 = smul.addr %s22, 32
          %s2101 = smul.addr %s21, 128
          %s2102 = sadd.s32 %s2100, %s2101
          %s2103 = smul.addr %s2102, 8
          %s2104 = scalar_lea.hbm %s3, %s2103
          %s2105 = sshll.u32 %s2094, 4
          %s2106 = int_to_ptr.vmem [resolvable:$true] %s2105
          %s2107 = sshll.u32 %s2104, 4
          %s2108 = int_to_ptr.hbm [resolvable:$true] %s2107
          %2113 = dma.vmem_to_hbm [thread:$0]  %s2106, 4096, %s2108, %s2091, 128, 128, 8
        $region36: #{tpu_custom_call.1} parent=31 // pred_fallthru
          _
      $region32: #{tpu_custom_call.1} parent=5 // pred_fallthru
        _
      %p2114 = scmp.le.s32.totalorder 2, %s12
      // Predicated region
      $region37: #{tpu_custom_call.1} parent=5 // pred_check
        %p2115 = pneg %p2114
      $region38: #{tpu_custom_call.1} parent=5 // pred_check_branch
        %2117 = sbr.rel (%p2115) target = $region40
      $region39: #{tpu_custom_call.1} parent=5 // pred_region
        %s2118 = ssub.s32 %s12, 2
        // Predicated region
        $region41: #{tpu_custom_call.1} parent=39 // pred_check
          %p2119 = pneg %p132
        $region42: #{tpu_custom_call.1} parent=39 // pred_check_branch
          %2121 = sbr.rel (%p2119) target = $region44
        $region43: #{tpu_custom_call.1} parent=39 // pred_region
          %s2122 = sand.u32 %s117, 1
          %s2123 = scalar_lea.sflag [#allocation3], %s2122
          %s2124 = sand.u32 %s117, 1
          %s2125 = smul.addr %s2124, 256
          %s2126 = scalar_lea.vmem [#allocation2], %s2125
          %2128 = dma.done %s2123, 4096
        $region44: #{tpu_custom_call.1} parent=39 // pred_fallthru
          _
      $region40: #{tpu_custom_call.1} parent=5 // pred_fallthru
        _
    $region6: #{tpu_custom_call.1} parent=1 // loop_footer
      %s16 = sadd.s32 1, %s12
    $region7: #{tpu_custom_call.1} parent=1 // loop_footer_branch
      %11 = sbr.rel target = $region3
    $region8: #{tpu_custom_call.1} parent=1 // loop_exit
      _
    %2129 = vsyncpa [#allocation3], 1
    %s2130 = scalar_lea.sflag [#allocation3], 1
    %2131 = vsyncpa %s2130, 1

</llo_original>
